<compile_context>
chip_gen: v7x
topology: tpu7x:2x2x1
jax: 0.10.0
libtpu: 0.0.40
codegen_flags: <defaults>
</compile_context>

<pallas_src>
import functools

import jax
import jax.numpy as jnp
from jax.experimental import pallas as pl
from jax.experimental.pallas import tpu as pltpu

_LANE = 128
_SUBLANE = 8
_MAX_TILE = 8192           # upper cap on rows per grid step (lane-dense blocks)
_F32_TEMPS_PER_ARRAY = 5   # x32, x*x, ssq/matmul, scaled, pre-cast out (conservative)


def _tpu_generation_info():
    """(vmem_capacity_bytes, tensorcores_per_chip), defensively probed.

    Falls back to the most conservative plan (64 MiB VMEM, 1 core) if the
    query API is unavailable, so the kernel still compiles everywhere."""
    vmem_cap = 64 << 20
    cores = 1
    try:
        info = pltpu.get_tpu_info()
    except Exception:
        return vmem_cap, cores
    vmem_cap = int(getattr(info, "vmem_capacity_bytes", vmem_cap) or vmem_cap)
    for attr in ("num_tensorcores", "tensorcore_count", "num_cores", "core_count"):
        val = getattr(info, attr, None)
        if val:
            cores = int(val)
            break
    else:
        # Heuristic: 64 MiB-per-TC parts (v7x-class) have 2 TensorCores/chip.
        if vmem_cap <= (64 << 20):
            cores = 2
    return vmem_cap, cores


def _vmem_plan(vmem_cap):
    """(row-tiling VMEM budget, vmem_limit_bytes) per TPU generation."""
    if vmem_cap <= (64 << 20):        # v7x-class: 64 MiB physical per TC
        return 36 << 20, 48 << 20
    return 48 << 20, 64 << 20         # v5e/v6e-class: 128 MiB physical


def _pick_row_tile(n_rows, lane_dim, in_bytes, out_bytes, *,
                   vmem_budget_bytes, min_grid_steps=1,
                   in_buffers=2, out_buffers=2, max_tile=_MAX_TILE):
    """Largest row tile (multiple of 8) whose *total* VMEM footprint fits the
    generation budget: pipelined q/k input+output buffers plus the in-kernel
    f32 intermediates the compiler materializes for the live block."""
    io_per_row = 2 * lane_dim * (in_buffers * in_bytes + out_buffers * out_bytes)
    f32_per_row = 2 * _F32_TEMPS_PER_ARRAY * lane_dim * 4
    bytes_per_row = io_per_row + f32_per_row
    tile = vmem_budget_bytes // max(bytes_per_row, 1)
    tile = max(_SUBLANE, min(max_tile, tile))
    if min_grid_steps > 1:
        # Leave >= min_grid_steps iterations so a 2-TC part can shard the
        # single "parallel" grid axis across its TensorCores.
        per_step = -(-n_rows // min_grid_steps)
        per_step = ((per_step + _SUBLANE - 1) // _SUBLANE) * _SUBLANE
        tile = min(tile, max(_SUBLANE, per_step))
    full = ((n_rows + _SUBLANE - 1) // _SUBLANE) * _SUBLANE
    tile = min(tile, full)
    return max(_SUBLANE, (tile // _SUBLANE) * _SUBLANE)


def _apply_scale(x32, rrms, s_row, x_dtype, out_dtype):
    # Matches PyTorch RMSNorm exactly:
    #   y = (x.float() * rrms).to(x.dtype) * scale   ;   out = y.to(v.dtype)
    y = (x32 * rrms).astype(x_dtype).astype(jnp.float32) * s_row
    return y.astype(out_dtype)


def _qknorm_simple_kernel(q_ref, k_ref, sq_ref, sk_ref, oq_ref, ok_ref, *, eps):
    """Row tile with the full head dim on the lane axis (dim >= 128 or dim not
    a divisor of 128)."""

    def _rms(x_ref, s_ref, o_ref):
        x32 = x_ref[...].astype(jnp.float32)
        rrms = jax.lax.rsqrt(jnp.mean(x32 * x32, axis=-1, keepdims=True) + eps)
        s_row = s_ref[...].astype(jnp.float32)
        o_ref[...] = _apply_scale(x32, rrms, s_row, x_ref.dtype, o_ref.dtype)

    _rms(q_ref, sq_ref, oq_ref)
    _rms(k_ref, sk_ref, ok_ref)


def _qknorm_packed_kernel(q_ref, k_ref, sq_ref, sk_ref, seg_ref,
                          oq_ref, ok_ref, *, dim, eps):
    """Lane-dense tile: each 128-wide lane row packs g = 128 // dim heads.

    Per-head sum of squares is a block-diagonal ones matmul (seg_ref) run at
    HIGHEST precision (full f32 MXU passes; the MXU is idle in this
    memory-bound kernel), so every tensor stays (rows, 128) lane-dense and the
    stores are unmasked full-vreg ops."""
    seg = seg_ref[...]  # (128, 128) f32 block-diagonal ones

    def _rms(x_ref, s_ref, o_ref):
        x32 = x_ref[...].astype(jnp.float32)
        ssq = jnp.dot(x32 * x32, seg,
                      preferred_element_type=jnp.float32,
                      precision=jax.lax.Precision.HIGHEST)
        rrms = jax.lax.rsqrt(ssq * (1.0 / dim) + eps)
        s_row = s_ref[...].astype(jnp.float32)
        o_ref[...] = _apply_scale(x32, rrms, s_row, x_ref.dtype, o_ref.dtype)

    _rms(q_ref, sq_ref, oq_ref)
    _rms(k_ref, sk_ref, ok_ref)


def qk_norm(q, k, v_dtype, q_scale, k_scale, *, eps=1e-6, row_tile=None):
    """Apply QKNorm. q, k: (..., dim). Returns (q_n, k_n) with dtype v_dtype."""
    assert q.shape == k.shape, "q and k must share a shape for this kernel"
    *lead, dim = q.shape
    n_rows = 1
    for s in lead:
        n_rows *= s

    q2 = q.reshape(n_rows, dim)
    k2 = k.reshape(n_rows, dim)

    in_bytes = q2.dtype.itemsize
    out_bytes = jnp.dtype(v_dtype).itemsize

    vmem_cap, n_cores = _tpu_generation_info()
    budget, vmem_limit = _vmem_plan(vmem_cap)
    small_vmem = vmem_cap <= (64 << 20)
    min_steps = 2 if n_cores >= 2 else 1

    # Lane-dense packing whenever the head dim under-fills the 128-lane vreg
    # and divides it; ragged row counts are padded to the packing factor.
    packed = (dim < _LANE) and (_LANE % dim == 0)
    pad_rows = 0
    if packed:
        g = _LANE // dim
        pad_rows = (-n_rows) % g
        if pad_rows:
            q2 = jnp.pad(q2, ((0, pad_rows), (0, 0)))
            k2 = jnp.pad(k2, ((0, pad_rows), (0, 0)))
        lane_dim = _LANE
        rows = (n_rows + pad_rows) // g
        q_in = q2.reshape(rows, lane_dim)      # pure row-major reshape
        k_in = k2.reshape(rows, lane_dim)
        sq = jnp.tile(q_scale.reshape(-1), g).reshape(1, lane_dim)
        sk = jnp.tile(k_scale.reshape(-1), g).reshape(1, lane_dim)
        gi = jax.lax.broadcasted_iota(jnp.int32, (lane_dim, lane_dim), 0) // dim
        gj = jax.lax.broadcasted_iota(jnp.int32, (lane_dim, lane_dim), 1) // dim
        seg = (gi == gj).astype(jnp.float32)   # block-diagonal ones
    else:
        lane_dim = dim
        rows = n_rows
        q_in, k_in = q2, k2
        sq = q_scale.reshape(1, dim)
        sk = k_scale.reshape(1, dim)

    auto_tile = row_tile is None
    if auto_tile:
        row_tile = _pick_row_tile(rows, lane_dim, in_bytes, out_bytes,
                                  vmem_budget_bytes=budget,
                                  min_grid_steps=min_steps)
    grid_steps = pl.cdiv(rows, row_tile)

    # v7x-class only: if the tighter VMEM cap forced a sub-max tile and there
    # are enough steps, triple-buffer the q/k inputs (re-sized to fit).
    in_pipeline_mode = None
    buffered_cls = getattr(pl, "Buffered", None)
    if (auto_tile and small_vmem and buffered_cls is not None
            and grid_steps >= 4 and row_tile < _MAX_TILE):
        row_tile = _pick_row_tile(rows, lane_dim, in_bytes, out_bytes,
                                  vmem_budget_bytes=budget,
                                  min_grid_steps=min_steps, in_buffers=3)
        grid_steps = pl.cdiv(rows, row_tile)
        in_pipeline_mode = buffered_cls(3)

    def _make_row_spec(pipeline_mode=None):
        if pipeline_mode is None:
            return pl.BlockSpec((row_tile, lane_dim), lambda i: (i, 0))
        try:
            return pl.BlockSpec((row_tile, lane_dim), lambda i: (i, 0),
                                pipeline_mode=pipeline_mode)
        except TypeError:  # older jax without pipeline_mode: default buffering
            return pl.BlockSpec((row_tile, lane_dim), lambda i: (i, 0))

    in_row_spec = _make_row_spec(in_pipeline_mode)
    out_row_spec = _make_row_spec(None)
    vec_spec = pl.BlockSpec((1, lane_dim), lambda i: (0, 0))

    flops = 8 * n_rows * dim
    if packed:
        flops += 2 * 2 * rows * lane_dim * lane_dim   # block-diag ssq matmuls
    cost = pl.CostEstimate(
        flops=flops,
        transcendentals=2 * n_rows,
        bytes_accessed=2 * n_rows * dim * (in_bytes + out_bytes),
    )

    out_shape = (
        jax.ShapeDtypeStruct((rows, lane_dim), v_dtype),
        jax.ShapeDtypeStruct((rows, lane_dim), v_dtype),
    )

    if packed:
        kernel = functools.partial(_qknorm_packed_kernel, dim=dim, eps=eps)
        seg_spec = pl.BlockSpec((lane_dim, lane_dim), lambda i: (0, 0))
        in_specs = [in_row_spec, in_row_spec, vec_spec, vec_spec, seg_spec]
        args = (q_in, k_in, sq, sk, seg)
    else:
        kernel = functools.partial(_qknorm_simple_kernel, eps=eps)
        in_specs = [in_row_spec, in_row_spec, vec_spec, vec_spec]
        args = (q_in, k_in, sq, sk)

    out_q, out_k = pl.pallas_call(
        kernel,
        out_shape=out_shape,
        grid=(grid_steps,),
        in_specs=in_specs,
        out_specs=(out_row_spec, out_row_spec),
        compiler_params=pltpu.CompilerParams(
            dimension_semantics=("parallel",),
            vmem_limit_bytes=vmem_limit,
        ),
        cost_estimate=cost,
    )(*args)

    if packed:
        out_q = out_q.reshape(-1, dim)[:n_rows]
        out_k = out_k.reshape(-1, dim)[:n_rows]
    out_q = out_q.reshape(*lead, dim)
    out_k = out_k.reshape(*lead, dim)
    return out_q, out_k


def _reference(q, k, v_dtype, q_scale, k_scale, eps=1e-6):
    def rms(x, scale):
        x32 = x.astype(jnp.float32)
        rrms = jax.lax.rsqrt(jnp.mean(x32 * x32, axis=-1, keepdims=True) + eps)
        y = (x32 * rrms).astype(x.dtype).astype(jnp.float32) * scale
        return y.astype(v_dtype)

    return rms(q, q_scale), rms(k, k_scale)


def _check(shape, seed=0, qk_dtype=jnp.float32):
    key = jax.random.PRNGKey(seed)
    kq, kk, kv, ks1, ks2 = jax.random.split(key, 5)
    D = shape[-1]

    q = jax.random.normal(kq, shape, dtype=jnp.float32).astype(qk_dtype)
    k = jax.random.normal(kk, shape, dtype=jnp.float32).astype(qk_dtype)
    # v is only used for dtype/device alignment in the PyTorch module.
    v = jax.random.normal(kv, shape, dtype=jnp.bfloat16)

    # Module init is ones; use non-trivial scales to exercise the math.
    q_scale = 1.0 + 0.1 * jax.random.normal(ks1, (D,), dtype=jnp.float32)
    k_scale = 1.0 + 0.1 * jax.random.normal(ks2, (D,), dtype=jnp.float32)

    qn, kn = qk_norm(q, k, v.dtype, q_scale, k_scale)
    jax.block_until_ready((qn, kn))

    qr, kr = _reference(q, k, v.dtype, q_scale, k_scale)
    assert qn.dtype == v.dtype and kn.dtype == v.dtype
    assert qn.shape == q.shape and kn.shape == k.shape
    assert jnp.allclose(qn.astype(jnp.float32), qr.astype(jnp.float32),
                        atol=1e-2, rtol=1e-2)
    assert jnp.allclose(kn.astype(jnp.float32), kr.astype(jnp.float32),
                        atol=1e-2, rtol=1e-2)


if __name__ == "__main__":
    # Small attention-like shapes: (batch, heads, seq, head_dim).
    _check((2, 4, 8, 32))                         # packed path, rows % g == 0
    _check((2, 2, 8, 128))                        # simple path, head_dim == 128
    _check((1, 3, 7, 32))                         # packed path with row padding
    _check((2, 4, 8, 32), qk_dtype=jnp.bfloat16)  # bf16 q/k round-trip
    print("KERNEL_OK")
</pallas_src>

<mosaic_0001>
module attributes {stable_mosaic.version = 11 : i64} {
  func.func @_qknorm_packed_kernel(%arg0: i32, %arg1: memref<16x128xf32, #tpu.memory_space<vmem>>, %arg2: memref<16x128xf32, #tpu.memory_space<vmem>>, %arg3: memref<1x128xf32, #tpu.memory_space<vmem>>, %arg4: memref<1x128xf32, #tpu.memory_space<vmem>>, %arg5: memref<128x128xf32, #tpu.memory_space<vmem>>, %arg6: memref<16x128xbf16, #tpu.memory_space<vmem>>, %arg7: memref<16x128xbf16, #tpu.memory_space<vmem>>) attributes {dimension_semantics = [#tpu.dimension_semantics<parallel>], iteration_bounds = array<i64: 1>, scalar_prefetch = 0 : i64, scratch_operands = 0 : i64, tpu.core_type = #tpu.core_type<tc>, window_params = [{transform_indices = @transform_0, window_bounds = array<i64: 16, 128>}, {transform_indices = @transform_1, window_bounds = array<i64: 16, 128>}, {pipeline_mode = #tpu.pipeline_mode<synchronous>, transform_indices = @transform_2, window_bounds = array<i64: 1, 128>}, {pipeline_mode = #tpu.pipeline_mode<synchronous>, transform_indices = @transform_3, window_bounds = array<i64: 1, 128>}, {pipeline_mode = #tpu.pipeline_mode<synchronous>, transform_indices = @transform_4, window_bounds = array<i64: 128, 128>}, {transform_indices = @transform_5, window_bounds = array<i64: 16, 128>}, {transform_indices = @transform_6, window_bounds = array<i64: 16, 128>}]} {
    %c0 = arith.constant 0 : index
    %c0_0 = arith.constant 0 : index
    %0 = vector.load %arg5[%c0, %c0_0] : memref<128x128xf32, #tpu.memory_space<vmem>>, vector<128x128xf32>
    %c0_1 = arith.constant 0 : index
    %c0_2 = arith.constant 0 : index
    %1 = vector.load %arg1[%c0_1, %c0_2] : memref<16x128xf32, #tpu.memory_space<vmem>>, vector<16x128xf32>
    %2 = arith.mulf %1, %1 : vector<16x128xf32>
    %cst = arith.constant dense<0.000000e+00> : vector<16x128xf32>
    %3 = tpu.matmul %2, %0, %cst {dimension_numbers = #tpu.dot_dimension_numbers<[1], [0], [0], [1], [0, 0, 1, 1], [], []>, precision = #tpu.contract_precision<fp32>} : vector<16x128xf32>, vector<128x128xf32>, vector<16x128xf32> -> vector<16x128xf32>
    %cst_3 = arith.constant 3.125000e-02 : f32
    %4 = vector.broadcast %cst_3 : f32 to vector<16x128xf32>
    %5 = arith.mulf %3, %4 : vector<16x128xf32>
    %cst_4 = arith.constant 9.99999997E-7 : f32
    %6 = vector.broadcast %cst_4 : f32 to vector<16x128xf32>
    %7 = arith.addf %5, %6 : vector<16x128xf32>
    %8 = math.rsqrt %7 : vector<16x128xf32>
    %c0_5 = arith.constant 0 : index
    %c0_6 = arith.constant 0 : index
    %9 = vector.load %arg3[%c0_5, %c0_6] : memref<1x128xf32, #tpu.memory_space<vmem>>, vector<1x128xf32>
    %10 = arith.mulf %1, %8 : vector<16x128xf32>
    %11 = vector.broadcast %9 : vector<1x128xf32> to vector<16x128xf32>
    %12 = arith.mulf %10, %11 : vector<16x128xf32>
    %13 = arith.truncf %12 : vector<16x128xf32> to vector<16x128xbf16>
    %c0_7 = arith.constant 0 : index
    %c0_8 = arith.constant 0 : index
    %14 = vector.load %arg6[%c0_7, %c0_8] : memref<16x128xbf16, #tpu.memory_space<vmem>>, vector<16x128xbf16>
    tpu.vector_store %arg6[%c0_7, %c0_8], %13 {strides = array<i32>} : memref<16x128xbf16, #tpu.memory_space<vmem>>, vector<16x128xbf16>,
    %c0_9 = arith.constant 0 : index
    %c0_10 = arith.constant 0 : index
    %15 = vector.load %arg2[%c0_9, %c0_10] : memref<16x128xf32, #tpu.memory_space<vmem>>, vector<16x128xf32>
    %16 = arith.mulf %15, %15 : vector<16x128xf32>
    %cst_11 = arith.constant dense<0.000000e+00> : vector<16x128xf32>
    %17 = tpu.matmul %16, %0, %cst_11 {dimension_numbers = #tpu.dot_dimension_numbers<[1], [0], [0], [1], [0, 0, 1, 1], [], []>, precision = #tpu.contract_precision<fp32>} : vector<16x128xf32>, vector<128x128xf32>, vector<16x128xf32> -> vector<16x128xf32>
    %cst_12 = arith.constant 3.125000e-02 : f32
    %18 = vector.broadcast %cst_12 : f32 to vector<16x128xf32>
    %19 = arith.mulf %17, %18 : vector<16x128xf32>
    %cst_13 = arith.constant 9.99999997E-7 : f32
    %20 = vector.broadcast %cst_13 : f32 to vector<16x128xf32>
    %21 = arith.addf %19, %20 : vector<16x128xf32>
    %22 = math.rsqrt %21 : vector<16x128xf32>
    %c0_14 = arith.constant 0 : index
    %c0_15 = arith.constant 0 : index
    %23 = vector.load %arg4[%c0_14, %c0_15] : memref<1x128xf32, #tpu.memory_space<vmem>>, vector<1x128xf32>
    %24 = arith.mulf %15, %22 : vector<16x128xf32>
    %25 = vector.broadcast %23 : vector<1x128xf32> to vector<16x128xf32>
    %26 = arith.mulf %24, %25 : vector<16x128xf32>
    %27 = arith.truncf %26 : vector<16x128xf32> to vector<16x128xbf16>
    %c0_16 = arith.constant 0 : index
    %c0_17 = arith.constant 0 : index
    %28 = vector.load %arg7[%c0_16, %c0_17] : memref<16x128xbf16, #tpu.memory_space<vmem>>, vector<16x128xbf16>
    tpu.vector_store %arg7[%c0_16, %c0_17], %27 {strides = array<i32>} : memref<16x128xbf16, #tpu.memory_space<vmem>>, vector<16x128xbf16>,
    return
  }
  func.func @transform_0(%arg0: i32) -> (i32, i32) {
    %c0_i32 = arith.constant 0 : i32
    %c0_i32_0 = arith.constant 0 : i32
    return %arg0, %c0_i32 : i32, i32
  }
  func.func @transform_1(%arg0: i32) -> (i32, i32) {
    %c0_i32 = arith.constant 0 : i32
    %c0_i32_0 = arith.constant 0 : i32
    return %arg0, %c0_i32 : i32, i32
  }
  func.func @transform_2(%arg0: i32) -> (i32, i32) {
    %c0_i32 = arith.constant 0 : i32
    %c0_i32_0 = arith.constant 0 : i32
    %c0_i32_1 = arith.constant 0 : i32
    return %c0_i32, %c0_i32_0 : i32, i32
  }
  func.func @transform_3(%arg0: i32) -> (i32, i32) {
    %c0_i32 = arith.constant 0 : i32
    %c0_i32_0 = arith.constant 0 : i32
    %c0_i32_1 = arith.constant 0 : i32
    return %c0_i32, %c0_i32_0 : i32, i32
  }
  func.func @transform_4(%arg0: i32) -> (i32, i32) {
    %c0_i32 = arith.constant 0 : i32
    %c0_i32_0 = arith.constant 0 : i32
    %c0_i32_1 = arith.constant 0 : i32
    return %c0_i32, %c0_i32_0 : i32, i32
  }
  func.func @transform_5(%arg0: i32) -> (i32, i32) {
    %c0_i32 = arith.constant 0 : i32
    %c0_i32_0 = arith.constant 0 : i32
    return %arg0, %c0_i32 : i32, i32
  }
  func.func @transform_6(%arg0: i32) -> (i32, i32) {
    %c0_i32 = arith.constant 0 : i32
    %c0_i32_0 = arith.constant 0 : i32
    return %arg0, %c0_i32 : i32, i32
  }
}

</mosaic_0001>

<llo_original>
// kernel: tpu_custom_call.1
$region0: #{tpu_custom_call.1}
  #allocation0 [shape = 'u32[]', space=smem, size = 0x4, offset = 0x4, fixed_abs, tag = 'smem constant byte address 0x4 - core index']
  #allocation1 [shape = 'u32[144,128]{1,0:T(1,128)}', space=vmem, size = 0x12000, scoped, tag = 'internal scratch']
  %s0 = inlined_call_operand.hbm [shape: f32[16,128], index: 0, kind: input, shape index: {}]
  %s1 = inlined_call_operand.hbm [shape: f32[16,128], index: 1, kind: input, shape index: {}]
  %s2 = inlined_call_operand.vmem [shape: f32[1,128], index: 2, kind: input, shape index: {}]
  %s3 = inlined_call_operand.vmem [shape: f32[1,128], index: 3, kind: input, shape index: {}]
  %s4 = inlined_call_operand.hbm [shape: f32[128,128], index: 4, kind: input, shape index: {}]
  %s5 = inlined_call_operand.hbm [shape: bf16[16,128], index: 5, kind: output, shape index: {0}]
  %s6 = inlined_call_operand.hbm [shape: bf16[16,128], index: 6, kind: output, shape index: {1}]
  %7 = xla_tuple %s5, %s6
  %s8 = sld [smem:[#allocation0]]
  $region50: #{tpu_custom_call.1} parent=0
    _
  %s10 = ssub.s32 1, %s8
  %s11 = scalar_select 0, %s10, %s8
  $region1: #{tpu_custom_call.1} parent=0
    #allocation2 [shape = 'u8[8192]{0}', space=vmem, size = 0x2000, scoped, tag = 'input window, operand 0, single buffered']
    #allocation3 [shape = 's32[1]{0}', space=sflag, size = 0x4, scoped, tag = 'scoped memory for tpu_custom_call.1']
    #allocation4 [shape = 's32[1]{0}', space=sflag, size = 0x4, scoped, tag = 'scoped memory for tpu_custom_call.1']
    #allocation5 [shape = 'u8[8192]{0}', space=vmem, size = 0x2000, scoped, tag = 'input window, operand 1, single buffered']
    #allocation6 [shape = 's32[1]{0}', space=sflag, size = 0x4, scoped, tag = 'scoped memory for tpu_custom_call.1']
    #allocation7 [shape = 'u8[65536]{0}', space=vmem, size = 0x10000, scoped, tag = 'input window, operand 4, single buffered']
    #allocation8 [shape = 'u8[4096]{0}', space=vmem, size = 0x1000, scoped, tag = 'output window, operand 0, single buffered']
    #allocation9 [shape = 'u8[4096]{0}', space=vmem, size = 0x1000, scoped, tag = 'output window, operand 1, single buffered']
    #allocation10 [shape = 's32[1]{0}', space=sflag, size = 0x4, scoped, tag = 'scoped memory for tpu_custom_call.1']
    %12 = vsyncpa [#allocation3], 0
    %13 = vsyncpa [#allocation6], 0
    %14 = vsyncpa [#allocation4], 0
    %15 = vsyncpa [#allocation10], 0
    // Predicated region
    $region2: #{tpu_custom_call.1} parent=1 // pred_check
      _
    $region3: #{tpu_custom_call.1} parent=1 // pred_check_branch
      %17 = sbr.rel (0) target = $region5
    $region4: #{tpu_custom_call.1} parent=1 // pred_region
      %s19 = ssub.s32 256, 256
      %20 = vsyncadd [#allocation3], %s19
      %s21 = sshll.u32 [#allocation2], 4
      %s22 = int_to_ptr.vmem [resolvable:$true] %s21
      %27 = dma.hbm_to_vmem [thread:$0]  %s0, 256, %s22, [#allocation3], 128, 128, 8
    $region5: #{tpu_custom_call.1} parent=1 // pred_fallthru
      _
    // Predicated region
    $region6: #{tpu_custom_call.1} parent=1 // pred_check
      _
    $region7: #{tpu_custom_call.1} parent=1 // pred_check_branch
      %29 = sbr.rel (0) target = $region9
    $region8: #{tpu_custom_call.1} parent=1 // pred_region
      %s31 = ssub.s32 256, 256
      %32 = vsyncadd [#allocation6], %s31
      %s33 = sshll.u32 [#allocation5], 4
      %s34 = int_to_ptr.vmem [resolvable:$true] %s33
      %39 = dma.hbm_to_vmem [thread:$0]  %s1, 256, %s34, [#allocation6], 128, 128, 8
    $region9: #{tpu_custom_call.1} parent=1 // pred_fallthru
      _
    // Predicated region
    $region10: #{tpu_custom_call.1} parent=1 // pred_check
      _
    $region11: #{tpu_custom_call.1} parent=1 // pred_check_branch
      %41 = sbr.rel (0) target = $region13
    $region12: #{tpu_custom_call.1} parent=1 // pred_region
      _
    $region13: #{tpu_custom_call.1} parent=1 // pred_fallthru
      _
    // Predicated region
    $region14: #{tpu_custom_call.1} parent=1 // pred_check
      _
    $region15: #{tpu_custom_call.1} parent=1 // pred_check_branch
      %43 = sbr.rel (0) target = $region17
    $region16: #{tpu_custom_call.1} parent=1 // pred_region
      _
    $region17: #{tpu_custom_call.1} parent=1 // pred_fallthru
      _
    // Predicated region
    $region18: #{tpu_custom_call.1} parent=1 // pred_check
      _
    $region19: #{tpu_custom_call.1} parent=1 // pred_check_branch
      %45 = sbr.rel (0) target = $region21
    $region20: #{tpu_custom_call.1} parent=1 // pred_region
      %s47 = ssub.s32 2048, 2048
      %48 = vsyncadd [#allocation6], %s47
      %s49 = sshll.u32 [#allocation7], 4
      %s50 = int_to_ptr.vmem [resolvable:$true] %s49
      %55 = dma.hbm_to_vmem [thread:$0]  %s4, 2048, %s50, [#allocation6], 128, 128, 8
    $region21: #{tpu_custom_call.1} parent=1 // pred_fallthru
      _
    // Predicated region
    $region22: #{tpu_custom_call.1} parent=1 // pred_check
      _
    $region23: #{tpu_custom_call.1} parent=1 // pred_check_branch
      %57 = sbr.rel (0) target = $region25
    $region24: #{tpu_custom_call.1} parent=1 // pred_region
      %58 = dma.done [#allocation3], 256
    $region25: #{tpu_custom_call.1} parent=1 // pred_fallthru
      _
    // Predicated region
    $region26: #{tpu_custom_call.1} parent=1 // pred_check
      _
    $region27: #{tpu_custom_call.1} parent=1 // pred_check_branch
      %60 = sbr.rel (0) target = $region29
    $region28: #{tpu_custom_call.1} parent=1 // pred_region
      %61 = dma.done [#allocation6], 256
    $region29: #{tpu_custom_call.1} parent=1 // pred_fallthru
      _
    // Predicated region
    $region30: #{tpu_custom_call.1} parent=1 // pred_check
      _
    $region31: #{tpu_custom_call.1} parent=1 // pred_check_branch
      %63 = sbr.rel (0) target = $region33
    $region32: #{tpu_custom_call.1} parent=1 // pred_region
      %64 = dma.done [#allocation6], 2048
    $region33: #{tpu_custom_call.1} parent=1 // pred_fallthru
      _
    %v65 = vld [vmem:[#allocation7] sm:$0xff]
    %v66 = vld [vmem:[#allocation7 + $0x8] sm:$0xff]
    %v67 = vld [vmem:[#allocation7 + $0x10] sm:$0xff]
    %v68 = vld [vmem:[#allocation7 + $0x18] sm:$0xff]
    %v69 = vld [vmem:[#allocation7 + $0x20] sm:$0xff]
    %v70 = vld [vmem:[#allocation7 + $0x28] sm:$0xff]
    %v71 = vld [vmem:[#allocation7 + $0x30] sm:$0xff]
    %v72 = vld [vmem:[#allocation7 + $0x38] sm:$0xff]
    %v73 = vld [vmem:[#allocation7 + $0x40] sm:$0xff]
    %v74 = vld [vmem:[#allocation7 + $0x48] sm:$0xff]
    %v75 = vld [vmem:[#allocation7 + $0x50] sm:$0xff]
    %v76 = vld [vmem:[#allocation7 + $0x58] sm:$0xff]
    %v77 = vld [vmem:[#allocation7 + $0x60] sm:$0xff]
    %v78 = vld [vmem:[#allocation7 + $0x68] sm:$0xff]
    %v79 = vld [vmem:[#allocation7 + $0x70] sm:$0xff]
    %v80 = vld [vmem:[#allocation7 + $0x78] sm:$0xff]
    %v81 = vld [vmem:[#allocation2] sm:$0xff]
    %v82 = vld [vmem:[#allocation2 + $0x8] sm:$0xff]
    %v83 = vmul.f32 %v81, %v81
    %v84 = vmul.f32 %v82, %v82
    %85 = vmatprep.subr.mxu0 0.0
    %v86 = vand.u32 %v65, 4294901760
    %87 = vmatpush1.msra.mxu0 %v86
    %88 = vmatprep.subr.mxu0 0.0
    %v89 = vand.u32 %v66, 4294901760
    %90 = vmatpush1.msra.mxu0 %v89
    %91 = vmatprep.subr.mxu0 0.0
    %v92 = vand.u32 %v67, 4294901760
    %93 = vmatpush1.msra.mxu0 %v92
    %94 = vmatprep.subr.mxu0 0.0
    %v95 = vand.u32 %v68, 4294901760
    %96 = vmatpush1.msra.mxu0 %v95
    %97 = vmatprep.subr.mxu0 0.0
    %v98 = vand.u32 %v69, 4294901760
    %99 = vmatpush1.msra.mxu0 %v98
    %100 = vmatprep.subr.mxu0 0.0
    %v101 = vand.u32 %v70, 4294901760
    %102 = vmatpush1.msra.mxu0 %v101
    %103 = vmatprep.subr.mxu0 0.0
    %v104 = vand.u32 %v71, 4294901760
    %105 = vmatpush1.msra.mxu0 %v104
    %106 = vmatprep.subr.mxu0 0.0
    %v107 = vand.u32 %v72, 4294901760
    %108 = vmatpush1.msra.mxu0 %v107
    %109 = vmatprep.subr.mxu0 0.0
    %v110 = vand.u32 %v73, 4294901760
    %111 = vmatpush1.msra.mxu0 %v110
    %112 = vmatprep.subr.mxu0 0.0
    %v113 = vand.u32 %v74, 4294901760
    %114 = vmatpush1.msra.mxu0 %v113
    %115 = vmatprep.subr.mxu0 0.0
    %v116 = vand.u32 %v75, 4294901760
    %117 = vmatpush1.msra.mxu0 %v116
    %118 = vmatprep.subr.mxu0 0.0
    %v119 = vand.u32 %v76, 4294901760
    %120 = vmatpush1.msra.mxu0 %v119
    %121 = vmatprep.subr.mxu0 0.0
    %v122 = vand.u32 %v77, 4294901760
    %123 = vmatpush1.msra.mxu0 %v122
    %124 = vmatprep.subr.mxu0 0.0
    %v125 = vand.u32 %v78, 4294901760
    %126 = vmatpush1.msra.mxu0 %v125
    %127 = vmatprep.subr.mxu0 0.0
    %v128 = vand.u32 %v79, 4294901760
    %129 = vmatpush1.msra.mxu0 %v128
    %130 = vmatprep.subr.mxu0 0.0
    %v131 = vand.u32 %v80, 4294901760
    %132 = vmatpush1.msra.mxu0 %v131
    %133 = vmatprep.subr.mxu0 0.0
    %134 = vmatpush1.msra.mxu0 0.0
    %135 = vmatprep.subr.mxu0 0.0
    %136 = vmatpush1.msra.mxu0 0.0
    %137 = vmatprep.subr.mxu0 0.0
    %138 = vmatpush1.msra.mxu0 0.0
    %139 = vmatprep.subr.mxu0 0.0
    %140 = vmatpush1.msra.mxu0 0.0
    %141 = vmatprep.subr.mxu0 0.0
    %142 = vmatpush1.msra.mxu0 0.0
    %143 = vmatprep.subr.mxu0 0.0
    %144 = vmatpush1.msra.mxu0 0.0
    %145 = vmatprep.subr.mxu0 0.0
    %146 = vmatpush1.msra.mxu0 0.0
    %147 = vmatprep.subr.mxu0 0.0
    %148 = vmatpush1.msra.mxu0 0.0
    %149 = vmatprep.subr.mxu0 0.0
    %150 = vmatpush1.msra.mxu0 0.0
    %151 = vmatprep.subr.mxu0 0.0
    %152 = vmatpush1.msra.mxu0 0.0
    %153 = vmatprep.subr.mxu0 0.0
    %154 = vmatpush1.msra.mxu0 0.0
    %155 = vmatprep.subr.mxu0 0.0
    %156 = vmatpush1.msra.mxu0 0.0
    %157 = vmatprep.subr.mxu0 0.0
    %158 = vmatpush1.msra.mxu0 0.0
    %159 = vmatprep.subr.mxu0 0.0
    %160 = vmatpush1.msra.mxu0 0.0
    %161 = vmatprep.subr.mxu0 0.0
    %162 = vmatpush1.msra.mxu0 0.0
    %163 = vmatprep.subr.mxu0 0.0
    %164 = vmatpush1.msra.mxu0 0.0
    %165 = vmatprep.mubr.f32.mxu0 0.0
    %v166 = vand.u32 %v83, 4294901760
    %v167 = vsub.f32 %v83, %v166
    %v168 = vand.u32 %v167, 4294901760
    %v169 = vsub.f32 %v167, %v168
    %v170 = vand.u32 %v169, 4294901760
    %171 = vmatmul.mubr.f32.gmra.mrb[0].mxu0 %v170
    %v172 = vpop.f32.mrb[0].mxu0
    %v173 = vadd.f32 0.0, %v172
    %v174 = vpop.f32.mrb[0].mxu0
    %175 = vmatprep.mubr.f32.mxu0 0.0
    %v176 = vand.u32 %v84, 4294901760
    %v177 = vsub.f32 %v84, %v176
    %v178 = vand.u32 %v177, 4294901760
    %v179 = vsub.f32 %v177, %v178
    %v180 = vand.u32 %v179, 4294901760
    %181 = vmatmul.mubr.f32.gmra.mrb[0].mxu0 %v180
    %v182 = vpop.f32.mrb[0].mxu0
    %v183 = vadd.f32 0.0, %v182
    %v184 = vpop.f32.mrb[0].mxu0
    %185 = vdwg.mxu0
    %186 = vmatprep.subr.mxu0 0.0
    %v187 = vand.u32 %v65, 4294901760
    %v188 = vsub.f32 %v65, %v187
    %v189 = vand.u32 %v188, 4294901760
    %v190 = vsub.f32 %v188, %v189
    %v191 = vand.u32 %v190, 4294901760
    %192 = vmatpush1.msra.mxu0 %v191
    %193 = vmatprep.subr.mxu0 0.0
    %v194 = vand.u32 %v66, 4294901760
    %v195 = vsub.f32 %v66, %v194
    %v196 = vand.u32 %v195, 4294901760
    %v197 = vsub.f32 %v195, %v196
    %v198 = vand.u32 %v197, 4294901760
    %199 = vmatpush1.msra.mxu0 %v198
    %200 = vmatprep.subr.mxu0 0.0
    %v201 = vand.u32 %v67, 4294901760
    %v202 = vsub.f32 %v67, %v201
    %v203 = vand.u32 %v202, 4294901760
    %v204 = vsub.f32 %v202, %v203
    %v205 = vand.u32 %v204, 4294901760
    %206 = vmatpush1.msra.mxu0 %v205
    %207 = vmatprep.subr.mxu0 0.0
    %v208 = vand.u32 %v68, 4294901760
    %v209 = vsub.f32 %v68, %v208
    %v210 = vand.u32 %v209, 4294901760
    %v211 = vsub.f32 %v209, %v210
    %v212 = vand.u32 %v211, 4294901760
    %213 = vmatpush1.msra.mxu0 %v212
    %214 = vmatprep.subr.mxu0 0.0
    %v215 = vand.u32 %v69, 4294901760
    %v216 = vsub.f32 %v69, %v215
    %v217 = vand.u32 %v216, 4294901760
    %v218 = vsub.f32 %v216, %v217
    %v219 = vand.u32 %v218, 4294901760
    %220 = vmatpush1.msra.mxu0 %v219
    %221 = vmatprep.subr.mxu0 0.0
    %v222 = vand.u32 %v70, 4294901760
    %v223 = vsub.f32 %v70, %v222
    %v224 = vand.u32 %v223, 4294901760
    %v225 = vsub.f32 %v223, %v224
    %v226 = vand.u32 %v225, 4294901760
    %227 = vmatpush1.msra.mxu0 %v226
    %228 = vmatprep.subr.mxu0 0.0
    %v229 = vand.u32 %v71, 4294901760
    %v230 = vsub.f32 %v71, %v229
    %v231 = vand.u32 %v230, 4294901760
    %v232 = vsub.f32 %v230, %v231
    %v233 = vand.u32 %v232, 4294901760
    %234 = vmatpush1.msra.mxu0 %v233
    %235 = vmatprep.subr.mxu0 0.0
    %v236 = vand.u32 %v72, 4294901760
    %v237 = vsub.f32 %v72, %v236
    %v238 = vand.u32 %v237, 4294901760
    %v239 = vsub.f32 %v237, %v238
    %v240 = vand.u32 %v239, 4294901760
    %241 = vmatpush1.msra.mxu0 %v240
    %242 = vmatprep.subr.mxu0 0.0
    %v243 = vand.u32 %v73, 4294901760
    %v244 = vsub.f32 %v73, %v243
    %v245 = vand.u32 %v244, 4294901760
    %v246 = vsub.f32 %v244, %v245
    %v247 = vand.u32 %v246, 4294901760
    %248 = vmatpush1.msra.mxu0 %v247
    %249 = vmatprep.subr.mxu0 0.0
    %v250 = vand.u32 %v74, 4294901760
    %v251 = vsub.f32 %v74, %v250
    %v252 = vand.u32 %v251, 4294901760
    %v253 = vsub.f32 %v251, %v252
    %v254 = vand.u32 %v253, 4294901760
    %255 = vmatpush1.msra.mxu0 %v254
    %256 = vmatprep.subr.mxu0 0.0
    %v257 = vand.u32 %v75, 4294901760
    %v258 = vsub.f32 %v75, %v257
    %v259 = vand.u32 %v258, 4294901760
    %v260 = vsub.f32 %v258, %v259
    %v261 = vand.u32 %v260, 4294901760
    %262 = vmatpush1.msra.mxu0 %v261
    %263 = vmatprep.subr.mxu0 0.0
    %v264 = vand.u32 %v76, 4294901760
    %v265 = vsub.f32 %v76, %v264
    %v266 = vand.u32 %v265, 4294901760
    %v267 = vsub.f32 %v265, %v266
    %v268 = vand.u32 %v267, 4294901760
    %269 = vmatpush1.msra.mxu0 %v268
    %270 = vmatprep.subr.mxu0 0.0
    %v271 = vand.u32 %v77, 4294901760
    %v272 = vsub.f32 %v77, %v271
    %v273 = vand.u32 %v272, 4294901760
    %v274 = vsub.f32 %v272, %v273
    %v275 = vand.u32 %v274, 4294901760
    %276 = vmatpush1.msra.mxu0 %v275
    %277 = vmatprep.subr.mxu0 0.0
    %v278 = vand.u32 %v78, 4294901760
    %v279 = vsub.f32 %v78, %v278
    %v280 = vand.u32 %v279, 4294901760
    %v281 = vsub.f32 %v279, %v280
    %v282 = vand.u32 %v281, 4294901760
    %283 = vmatpush1.msra.mxu0 %v282
    %284 = vmatprep.subr.mxu0 0.0
    %v285 = vand.u32 %v79, 4294901760
    %v286 = vsub.f32 %v79, %v285
    %v287 = vand.u32 %v286, 4294901760
    %v288 = vsub.f32 %v286, %v287
    %v289 = vand.u32 %v288, 4294901760
    %290 = vmatpush1.msra.mxu0 %v289
    %291 = vmatprep.subr.mxu0 0.0
    %v292 = vand.u32 %v80, 4294901760
    %v293 = vsub.f32 %v80, %v292
    %v294 = vand.u32 %v293, 4294901760
    %v295 = vsub.f32 %v293, %v294
    %v296 = vand.u32 %v295, 4294901760
    %297 = vmatpush1.msra.mxu0 %v296
    %298 = vmatprep.subr.mxu0 0.0
    %299 = vmatpush1.msra.mxu0 0.0
    %300 = vmatprep.subr.mxu0 0.0
    %301 = vmatpush1.msra.mxu0 0.0
    %302 = vmatprep.subr.mxu0 0.0
    %303 = vmatpush1.msra.mxu0 0.0
    %304 = vmatprep.subr.mxu0 0.0
    %305 = vmatpush1.msra.mxu0 0.0
    %306 = vmatprep.subr.mxu0 0.0
    %307 = vmatpush1.msra.mxu0 0.0
    %308 = vmatprep.subr.mxu0 0.0
    %309 = vmatpush1.msra.mxu0 0.0
    %310 = vmatprep.subr.mxu0 0.0
    %311 = vmatpush1.msra.mxu0 0.0
    %312 = vmatprep.subr.mxu0 0.0
    %313 = vmatpush1.msra.mxu0 0.0
    %314 = vmatprep.subr.mxu0 0.0
    %315 = vmatpush1.msra.mxu0 0.0
    %316 = vmatprep.subr.mxu0 0.0
    %317 = vmatpush1.msra.mxu0 0.0
    %318 = vmatprep.subr.mxu0 0.0
    %319 = vmatpush1.msra.mxu0 0.0
    %320 = vmatprep.subr.mxu0 0.0
    %321 = vmatpush1.msra.mxu0 0.0
    %322 = vmatprep.subr.mxu0 0.0
    %323 = vmatpush1.msra.mxu0 0.0
    %324 = vmatprep.subr.mxu0 0.0
    %325 = vmatpush1.msra.mxu0 0.0
    %326 = vmatprep.subr.mxu0 0.0
    %327 = vmatpush1.msra.mxu0 0.0
    %328 = vmatprep.subr.mxu0 0.0
    %329 = vmatpush1.msra.mxu0 0.0
    %330 = vmatprep.mubr.f32.mxu0 0.0
    %v331 = vand.u32 %v83, 4294901760
    %332 = vmatmul.mubr.f32.gmra.mrb[0].mxu0 %v331
    %v333 = vpop.f32.mrb[0].mxu0
    %v334 = vadd.f32 %v173, %v333
    %v335 = vpop.f32.mrb[0].mxu0
    %336 = vmatprep.mubr.f32.mxu0 0.0
    %v337 = vand.u32 %v84, 4294901760
    %338 = vmatmul.mubr.f32.gmra.mrb[0].mxu0 %v337
    %v339 = vpop.f32.mrb[0].mxu0
    %v340 = vadd.f32 %v183, %v339
    %v341 = vpop.f32.mrb[0].mxu0
    %342 = vdwg.mxu0
    %343 = vmatprep.subr.mxu0 0.0
    %v344 = vand.u32 %v65, 4294901760
    %v345 = vsub.f32 %v65, %v344
    %346 = vmatpush1.msra.mxu0 %v345
    %347 = vmatprep.subr.mxu0 0.0
    %v348 = vand.u32 %v66, 4294901760
    %v349 = vsub.f32 %v66, %v348
    %350 = vmatpush1.msra.mxu0 %v349
    %351 = vmatprep.subr.mxu0 0.0
    %v352 = vand.u32 %v67, 4294901760
    %v353 = vsub.f32 %v67, %v352
    %354 = vmatpush1.msra.mxu0 %v353
    %355 = vmatprep.subr.mxu0 0.0
    %v356 = vand.u32 %v68, 4294901760
    %v357 = vsub.f32 %v68, %v356
    %358 = vmatpush1.msra.mxu0 %v357
    %359 = vmatprep.subr.mxu0 0.0
    %v360 = vand.u32 %v69, 4294901760
    %v361 = vsub.f32 %v69, %v360
    %362 = vmatpush1.msra.mxu0 %v361
    %363 = vmatprep.subr.mxu0 0.0
    %v364 = vand.u32 %v70, 4294901760
    %v365 = vsub.f32 %v70, %v364
    %366 = vmatpush1.msra.mxu0 %v365
    %367 = vmatprep.subr.mxu0 0.0
    %v368 = vand.u32 %v71, 4294901760
    %v369 = vsub.f32 %v71, %v368
    %370 = vmatpush1.msra.mxu0 %v369
    %371 = vmatprep.subr.mxu0 0.0
    %v372 = vand.u32 %v72, 4294901760
    %v373 = vsub.f32 %v72, %v372
    %374 = vmatpush1.msra.mxu0 %v373
    %375 = vmatprep.subr.mxu0 0.0
    %v376 = vand.u32 %v73, 4294901760
    %v377 = vsub.f32 %v73, %v376
    %378 = vmatpush1.msra.mxu0 %v377
    %379 = vmatprep.subr.mxu0 0.0
    %v380 = vand.u32 %v74, 4294901760
    %v381 = vsub.f32 %v74, %v380
    %382 = vmatpush1.msra.mxu0 %v381
    %383 = vmatprep.subr.mxu0 0.0
    %v384 = vand.u32 %v75, 4294901760
    %v385 = vsub.f32 %v75, %v384
    %386 = vmatpush1.msra.mxu0 %v385
    %387 = vmatprep.subr.mxu0 0.0
    %v388 = vand.u32 %v76, 4294901760
    %v389 = vsub.f32 %v76, %v388
    %390 = vmatpush1.msra.mxu0 %v389
    %391 = vmatprep.subr.mxu0 0.0
    %v392 = vand.u32 %v77, 4294901760
    %v393 = vsub.f32 %v77, %v392
    %394 = vmatpush1.msra.mxu0 %v393
    %395 = vmatprep.subr.mxu0 0.0
    %v396 = vand.u32 %v78, 4294901760
    %v397 = vsub.f32 %v78, %v396
    %398 = vmatpush1.msra.mxu0 %v397
    %399 = vmatprep.subr.mxu0 0.0
    %v400 = vand.u32 %v79, 4294901760
    %v401 = vsub.f32 %v79, %v400
    %402 = vmatpush1.msra.mxu0 %v401
    %403 = vmatprep.subr.mxu0 0.0
    %v404 = vand.u32 %v80, 4294901760
    %v405 = vsub.f32 %v80, %v404
    %406 = vmatpush1.msra.mxu0 %v405
    %407 = vmatprep.subr.mxu0 0.0
    %408 = vmatpush1.msra.mxu0 0.0
    %409 = vmatprep.subr.mxu0 0.0
    %410 = vmatpush1.msra.mxu0 0.0
    %411 = vmatprep.subr.mxu0 0.0
    %412 = vmatpush1.msra.mxu0 0.0
    %413 = vmatprep.subr.mxu0 0.0
    %414 = vmatpush1.msra.mxu0 0.0
    %415 = vmatprep.subr.mxu0 0.0
    %416 = vmatpush1.msra.mxu0 0.0
    %417 = vmatprep.subr.mxu0 0.0
    %418 = vmatpush1.msra.mxu0 0.0
    %419 = vmatprep.subr.mxu0 0.0
    %420 = vmatpush1.msra.mxu0 0.0
    %421 = vmatprep.subr.mxu0 0.0
    %422 = vmatpush1.msra.mxu0 0.0
    %423 = vmatprep.subr.mxu0 0.0
    %424 = vmatpush1.msra.mxu0 0.0
    %425 = vmatprep.subr.mxu0 0.0
    %426 = vmatpush1.msra.mxu0 0.0
    %427 = vmatprep.subr.mxu0 0.0
    %428 = vmatpush1.msra.mxu0 0.0
    %429 = vmatprep.subr.mxu0 0.0
    %430 = vmatpush1.msra.mxu0 0.0
    %431 = vmatprep.subr.mxu0 0.0
    %432 = vmatpush1.msra.mxu0 0.0
    %433 = vmatprep.subr.mxu0 0.0
    %434 = vmatpush1.msra.mxu0 0.0
    %435 = vmatprep.subr.mxu0 0.0
    %436 = vmatpush1.msra.mxu0 0.0
    %437 = vmatprep.subr.mxu0 0.0
    %438 = vmatpush1.msra.mxu0 0.0
    %439 = vmatprep.mubr.f32.mxu0 0.0
    %v440 = vand.u32 %v83, 4294901760
    %v441 = vsub.f32 %v83, %v440
    %442 = vmatmul.mubr.f32.gmra.mrb[0].mxu0 %v441
    %v443 = vpop.f32.mrb[0].mxu0
    %v444 = vadd.f32 %v334, %v443
    %v445 = vpop.f32.mrb[0].mxu0
    %446 = vmatprep.mubr.f32.mxu0 0.0
    %v447 = vand.u32 %v84, 4294901760
    %v448 = vsub.f32 %v84, %v447
    %449 = vmatmul.mubr.f32.gmra.mrb[0].mxu0 %v448
    %v450 = vpop.f32.mrb[0].mxu0
    %v451 = vadd.f32 %v340, %v450
    %v452 = vpop.f32.mrb[0].mxu0
    %453 = vdwg.mxu0
    %454 = vmatprep.subr.mxu0 0.0
    %v455 = vand.u32 %v65, 4294901760
    %456 = vmatpush1.msra.mxu0 %v455
    %457 = vmatprep.subr.mxu0 0.0
    %v458 = vand.u32 %v66, 4294901760
    %459 = vmatpush1.msra.mxu0 %v458
    %460 = vmatprep.subr.mxu0 0.0
    %v461 = vand.u32 %v67, 4294901760
    %462 = vmatpush1.msra.mxu0 %v461
    %463 = vmatprep.subr.mxu0 0.0
    %v464 = vand.u32 %v68, 4294901760
    %465 = vmatpush1.msra.mxu0 %v464
    %466 = vmatprep.subr.mxu0 0.0
    %v467 = vand.u32 %v69, 4294901760
    %468 = vmatpush1.msra.mxu0 %v467
    %469 = vmatprep.subr.mxu0 0.0
    %v470 = vand.u32 %v70, 4294901760
    %471 = vmatpush1.msra.mxu0 %v470
    %472 = vmatprep.subr.mxu0 0.0
    %v473 = vand.u32 %v71, 4294901760
    %474 = vmatpush1.msra.mxu0 %v473
    %475 = vmatprep.subr.mxu0 0.0
    %v476 = vand.u32 %v72, 4294901760
    %477 = vmatpush1.msra.mxu0 %v476
    %478 = vmatprep.subr.mxu0 0.0
    %v479 = vand.u32 %v73, 4294901760
    %480 = vmatpush1.msra.mxu0 %v479
    %481 = vmatprep.subr.mxu0 0.0
    %v482 = vand.u32 %v74, 4294901760
    %483 = vmatpush1.msra.mxu0 %v482
    %484 = vmatprep.subr.mxu0 0.0
    %v485 = vand.u32 %v75, 4294901760
    %486 = vmatpush1.msra.mxu0 %v485
    %487 = vmatprep.subr.mxu0 0.0
    %v488 = vand.u32 %v76, 4294901760
    %489 = vmatpush1.msra.mxu0 %v488
    %490 = vmatprep.subr.mxu0 0.0
    %v491 = vand.u32 %v77, 4294901760
    %492 = vmatpush1.msra.mxu0 %v491
    %493 = vmatprep.subr.mxu0 0.0
    %v494 = vand.u32 %v78, 4294901760
    %495 = vmatpush1.msra.mxu0 %v494
    %496 = vmatprep.subr.mxu0 0.0
    %v497 = vand.u32 %v79, 4294901760
    %498 = vmatpush1.msra.mxu0 %v497
    %499 = vmatprep.subr.mxu0 0.0
    %v500 = vand.u32 %v80, 4294901760
    %501 = vmatpush1.msra.mxu0 %v500
    %502 = vmatprep.subr.mxu0 0.0
    %503 = vmatpush1.msra.mxu0 0.0
    %504 = vmatprep.subr.mxu0 0.0
    %505 = vmatpush1.msra.mxu0 0.0
    %506 = vmatprep.subr.mxu0 0.0
    %507 = vmatpush1.msra.mxu0 0.0
    %508 = vmatprep.subr.mxu0 0.0
    %509 = vmatpush1.msra.mxu0 0.0
    %510 = vmatprep.subr.mxu0 0.0
    %511 = vmatpush1.msra.mxu0 0.0
    %512 = vmatprep.subr.mxu0 0.0
    %513 = vmatpush1.msra.mxu0 0.0
    %514 = vmatprep.subr.mxu0 0.0
    %515 = vmatpush1.msra.mxu0 0.0
    %516 = vmatprep.subr.mxu0 0.0
    %517 = vmatpush1.msra.mxu0 0.0
    %518 = vmatprep.subr.mxu0 0.0
    %519 = vmatpush1.msra.mxu0 0.0
    %520 = vmatprep.subr.mxu0 0.0
    %521 = vmatpush1.msra.mxu0 0.0
    %522 = vmatprep.subr.mxu0 0.0
    %523 = vmatpush1.msra.mxu0 0.0
    %524 = vmatprep.subr.mxu0 0.0
    %525 = vmatpush1.msra.mxu0 0.0
    %526 = vmatprep.subr.mxu0 0.0
    %527 = vmatpush1.msra.mxu0 0.0
    %528 = vmatprep.subr.mxu0 0.0
    %529 = vmatpush1.msra.mxu0 0.0
    %530 = vmatprep.subr.mxu0 0.0
    %531 = vmatpush1.msra.mxu0 0.0
    %532 = vmatprep.subr.mxu0 0.0
    %533 = vmatpush1.msra.mxu0 0.0
    %534 = vmatprep.mubr.f32.mxu0 0.0
    %v535 = vand.u32 %v83, 4294901760
    %v536 = vsub.f32 %v83, %v535
    %v537 = vand.u32 %v536, 4294901760
    %538 = vmatmul.mubr.f32.gmra.mrb[0].mxu0 %v537
    %v539 = vpop.f32.mrb[0].mxu0
    %v540 = vadd.f32 %v444, %v539
    %v541 = vpop.f32.mrb[0].mxu0
    %542 = vmatprep.mubr.f32.mxu0 0.0
    %v543 = vand.u32 %v84, 4294901760
    %v544 = vsub.f32 %v84, %v543
    %v545 = vand.u32 %v544, 4294901760
    %546 = vmatmul.mubr.f32.gmra.mrb[0].mxu0 %v545
    %v547 = vpop.f32.mrb[0].mxu0
    %v548 = vadd.f32 %v451, %v547
    %v549 = vpop.f32.mrb[0].mxu0
    %550 = vdwg.mxu0
    %551 = vmatprep.subr.mxu0 0.0
    %v552 = vand.u32 %v65, 4294901760
    %v553 = vsub.f32 %v65, %v552
    %v554 = vand.u32 %v553, 4294901760
    %555 = vmatpush1.msra.mxu0 %v554
    %556 = vmatprep.subr.mxu0 0.0
    %v557 = vand.u32 %v66, 4294901760
    %v558 = vsub.f32 %v66, %v557
    %v559 = vand.u32 %v558, 4294901760
    %560 = vmatpush1.msra.mxu0 %v559
    %561 = vmatprep.subr.mxu0 0.0
    %v562 = vand.u32 %v67, 4294901760
    %v563 = vsub.f32 %v67, %v562
    %v564 = vand.u32 %v563, 4294901760
    %565 = vmatpush1.msra.mxu0 %v564
    %566 = vmatprep.subr.mxu0 0.0
    %v567 = vand.u32 %v68, 4294901760
    %v568 = vsub.f32 %v68, %v567
    %v569 = vand.u32 %v568, 4294901760
    %570 = vmatpush1.msra.mxu0 %v569
    %571 = vmatprep.subr.mxu0 0.0
    %v572 = vand.u32 %v69, 4294901760
    %v573 = vsub.f32 %v69, %v572
    %v574 = vand.u32 %v573, 4294901760
    %575 = vmatpush1.msra.mxu0 %v574
    %576 = vmatprep.subr.mxu0 0.0
    %v577 = vand.u32 %v70, 4294901760
    %v578 = vsub.f32 %v70, %v577
    %v579 = vand.u32 %v578, 4294901760
    %580 = vmatpush1.msra.mxu0 %v579
    %581 = vmatprep.subr.mxu0 0.0
    %v582 = vand.u32 %v71, 4294901760
    %v583 = vsub.f32 %v71, %v582
    %v584 = vand.u32 %v583, 4294901760
    %585 = vmatpush1.msra.mxu0 %v584
    %586 = vmatprep.subr.mxu0 0.0
    %v587 = vand.u32 %v72, 4294901760
    %v588 = vsub.f32 %v72, %v587
    %v589 = vand.u32 %v588, 4294901760
    %590 = vmatpush1.msra.mxu0 %v589
    %591 = vmatprep.subr.mxu0 0.0
    %v592 = vand.u32 %v73, 4294901760
    %v593 = vsub.f32 %v73, %v592
    %v594 = vand.u32 %v593, 4294901760
    %595 = vmatpush1.msra.mxu0 %v594
    %596 = vmatprep.subr.mxu0 0.0
    %v597 = vand.u32 %v74, 4294901760
    %v598 = vsub.f32 %v74, %v597
    %v599 = vand.u32 %v598, 4294901760
    %600 = vmatpush1.msra.mxu0 %v599
    %601 = vmatprep.subr.mxu0 0.0
    %v602 = vand.u32 %v75, 4294901760
    %v603 = vsub.f32 %v75, %v602
    %v604 = vand.u32 %v603, 4294901760
    %605 = vmatpush1.msra.mxu0 %v604
    %606 = vmatprep.subr.mxu0 0.0
    %v607 = vand.u32 %v76, 4294901760
    %v608 = vsub.f32 %v76, %v607
    %v609 = vand.u32 %v608, 4294901760
    %610 = vmatpush1.msra.mxu0 %v609
    %611 = vmatprep.subr.mxu0 0.0
    %v612 = vand.u32 %v77, 4294901760
    %v613 = vsub.f32 %v77, %v612
    %v614 = vand.u32 %v613, 4294901760
    %615 = vmatpush1.msra.mxu0 %v614
    %616 = vmatprep.subr.mxu0 0.0
    %v617 = vand.u32 %v78, 4294901760
    %v618 = vsub.f32 %v78, %v617
    %v619 = vand.u32 %v618, 4294901760
    %620 = vmatpush1.msra.mxu0 %v619
    %621 = vmatprep.subr.mxu0 0.0
    %v622 = vand.u32 %v79, 4294901760
    %v623 = vsub.f32 %v79, %v622
    %v624 = vand.u32 %v623, 4294901760
    %625 = vmatpush1.msra.mxu0 %v624
    %626 = vmatprep.subr.mxu0 0.0
    %v627 = vand.u32 %v80, 4294901760
    %v628 = vsub.f32 %v80, %v627
    %v629 = vand.u32 %v628, 4294901760
    %630 = vmatpush1.msra.mxu0 %v629
    %631 = vmatprep.subr.mxu0 0.0
    %632 = vmatpush1.msra.mxu0 0.0
    %633 = vmatprep.subr.mxu0 0.0
    %634 = vmatpush1.msra.mxu0 0.0
    %635 = vmatprep.subr.mxu0 0.0
    %636 = vmatpush1.msra.mxu0 0.0
    %637 = vmatprep.subr.mxu0 0.0
    %638 = vmatpush1.msra.mxu0 0.0
    %639 = vmatprep.subr.mxu0 0.0
    %640 = vmatpush1.msra.mxu0 0.0
    %641 = vmatprep.subr.mxu0 0.0
    %642 = vmatpush1.msra.mxu0 0.0
    %643 = vmatprep.subr.mxu0 0.0
    %644 = vmatpush1.msra.mxu0 0.0
    %645 = vmatprep.subr.mxu0 0.0
    %646 = vmatpush1.msra.mxu0 0.0
    %647 = vmatprep.subr.mxu0 0.0
    %648 = vmatpush1.msra.mxu0 0.0
    %649 = vmatprep.subr.mxu0 0.0
    %650 = vmatpush1.msra.mxu0 0.0
    %651 = vmatprep.subr.mxu0 0.0
    %652 = vmatpush1.msra.mxu0 0.0
    %653 = vmatprep.subr.mxu0 0.0
    %654 = vmatpush1.msra.mxu0 0.0
    %655 = vmatprep.subr.mxu0 0.0
    %656 = vmatpush1.msra.mxu0 0.0
    %657 = vmatprep.subr.mxu0 0.0
    %658 = vmatpush1.msra.mxu0 0.0
    %659 = vmatprep.subr.mxu0 0.0
    %660 = vmatpush1.msra.mxu0 0.0
    %661 = vmatprep.subr.mxu0 0.0
    %662 = vmatpush1.msra.mxu0 0.0
    %663 = vmatprep.mubr.f32.mxu0 0.0
    %v664 = vand.u32 %v83, 4294901760
    %665 = vmatmul.mubr.f32.gmra.mrb[0].mxu0 %v664
    %v666 = vpop.f32.mrb[0].mxu0
    %v667 = vadd.f32 %v540, %v666
    %v668 = vpop.f32.mrb[0].mxu0
    %669 = vmatprep.mubr.f32.mxu0 0.0
    %v670 = vand.u32 %v84, 4294901760
    %671 = vmatmul.mubr.f32.gmra.mrb[0].mxu0 %v670
    %v672 = vpop.f32.mrb[0].mxu0
    %v673 = vadd.f32 %v548, %v672
    %v674 = vpop.f32.mrb[0].mxu0
    %675 = vdwg.mxu0
    %676 = vmatprep.subr.mxu0 0.0
    %v677 = vand.u32 %v65, 4294901760
    %678 = vmatpush1.msra.mxu0 %v677
    %679 = vmatprep.subr.mxu0 0.0
    %v680 = vand.u32 %v66, 4294901760
    %681 = vmatpush1.msra.mxu0 %v680
    %682 = vmatprep.subr.mxu0 0.0
    %v683 = vand.u32 %v67, 4294901760
    %684 = vmatpush1.msra.mxu0 %v683
    %685 = vmatprep.subr.mxu0 0.0
    %v686 = vand.u32 %v68, 4294901760
    %687 = vmatpush1.msra.mxu0 %v686
    %688 = vmatprep.subr.mxu0 0.0
    %v689 = vand.u32 %v69, 4294901760
    %690 = vmatpush1.msra.mxu0 %v689
    %691 = vmatprep.subr.mxu0 0.0
    %v692 = vand.u32 %v70, 4294901760
    %693 = vmatpush1.msra.mxu0 %v692
    %694 = vmatprep.subr.mxu0 0.0
    %v695 = vand.u32 %v71, 4294901760
    %696 = vmatpush1.msra.mxu0 %v695
    %697 = vmatprep.subr.mxu0 0.0
    %v698 = vand.u32 %v72, 4294901760
    %699 = vmatpush1.msra.mxu0 %v698
    %700 = vmatprep.subr.mxu0 0.0
    %v701 = vand.u32 %v73, 4294901760
    %702 = vmatpush1.msra.mxu0 %v701
    %703 = vmatprep.subr.mxu0 0.0
    %v704 = vand.u32 %v74, 4294901760
    %705 = vmatpush1.msra.mxu0 %v704
    %706 = vmatprep.subr.mxu0 0.0
    %v707 = vand.u32 %v75, 4294901760
    %708 = vmatpush1.msra.mxu0 %v707
    %709 = vmatprep.subr.mxu0 0.0
    %v710 = vand.u32 %v76, 4294901760
    %711 = vmatpush1.msra.mxu0 %v710
    %712 = vmatprep.subr.mxu0 0.0
    %v713 = vand.u32 %v77, 4294901760
    %714 = vmatpush1.msra.mxu0 %v713
    %715 = vmatprep.subr.mxu0 0.0
    %v716 = vand.u32 %v78, 4294901760
    %717 = vmatpush1.msra.mxu0 %v716
    %718 = vmatprep.subr.mxu0 0.0
    %v719 = vand.u32 %v79, 4294901760
    %720 = vmatpush1.msra.mxu0 %v719
    %721 = vmatprep.subr.mxu0 0.0
    %v722 = vand.u32 %v80, 4294901760
    %723 = vmatpush1.msra.mxu0 %v722
    %724 = vmatprep.subr.mxu0 0.0
    %725 = vmatpush1.msra.mxu0 0.0
    %726 = vmatprep.subr.mxu0 0.0
    %727 = vmatpush1.msra.mxu0 0.0
    %728 = vmatprep.subr.mxu0 0.0
    %729 = vmatpush1.msra.mxu0 0.0
    %730 = vmatprep.subr.mxu0 0.0
    %731 = vmatpush1.msra.mxu0 0.0
    %732 = vmatprep.subr.mxu0 0.0
    %733 = vmatpush1.msra.mxu0 0.0
    %734 = vmatprep.subr.mxu0 0.0
    %735 = vmatpush1.msra.mxu0 0.0
    %736 = vmatprep.subr.mxu0 0.0
    %737 = vmatpush1.msra.mxu0 0.0
    %738 = vmatprep.subr.mxu0 0.0
    %739 = vmatpush1.msra.mxu0 0.0
    %740 = vmatprep.subr.mxu0 0.0
    %741 = vmatpush1.msra.mxu0 0.0
    %742 = vmatprep.subr.mxu0 0.0
    %743 = vmatpush1.msra.mxu0 0.0
    %744 = vmatprep.subr.mxu0 0.0
    %745 = vmatpush1.msra.mxu0 0.0
    %746 = vmatprep.subr.mxu0 0.0
    %747 = vmatpush1.msra.mxu0 0.0
    %748 = vmatprep.subr.mxu0 0.0
    %749 = vmatpush1.msra.mxu0 0.0
    %750 = vmatprep.subr.mxu0 0.0
    %751 = vmatpush1.msra.mxu0 0.0
    %752 = vmatprep.subr.mxu0 0.0
    %753 = vmatpush1.msra.mxu0 0.0
    %754 = vmatprep.subr.mxu0 0.0
    %755 = vmatpush1.msra.mxu0 0.0
    %756 = vmatprep.mubr.f32.mxu0 0.0
    %v757 = vand.u32 %v83, 4294901760
    %758 = vmatmul.mubr.f32.gmra.mrb[0].mxu0 %v757
    %v759 = vpop.f32.mrb[0].mxu0
    %v760 = vadd.f32 %v667, %v759
    %v761 = vpop.f32.mrb[0].mxu0
    %762 = vmatprep.mubr.f32.mxu0 0.0
    %v763 = vand.u32 %v84, 4294901760
    %764 = vmatmul.mubr.f32.gmra.mrb[0].mxu0 %v763
    %v765 = vpop.f32.mrb[0].mxu0
    %v766 = vadd.f32 %v673, %v765
    %v767 = vpop.f32.mrb[0].mxu0
    %768 = vdwg.mxu0
    %v769 = vmul.f32 %v760, 0.03125
    %v770 = vmul.f32 %v766, 0.03125
    %v771 = vadd.f32 %v769, 1e-06
    %v772 = vadd.f32 %v770, 1e-06
    %v773 = vrsqrt.pop %v771
    %v774 = vrsqrt.pop %v772
    %v775 = vld [vmem:[%s2] sm:$0x1]
    %v776 = vmul.f32 %v81, %v773
    %v777 = vmul.f32 %v82, %v774
    %v779 = vlaneseq
    %v780 = vshrl.u32 %v779, 7
    %v781 = vsub.s32 0, %v780
    %v782 = vrot.slane %v775, %v781
    %v784 = vmul.f32 %v776, %v782
    %v785 = vmul.f32 %v777, %v782
    %v786 = vpack.c.bf16 %v785, %v784
    %v788 = vunpack.c.l.b16 %v786
    %v789 = vunpack.c.h.b16 %v786
    %v790 = vpack.c.b16 %v788, %v788
    %v791 = vpack.c.b16 %v789, %v789
    %794 = vst [vmem:[#allocation8] sm:$0xf] %v790
    %795 = vst [vmem:[#allocation8 + $0x4] sm:$0xf] %v791
    %v796 = vld [vmem:[#allocation5] sm:$0xff]
    %v797 = vld [vmem:[#allocation5 + $0x8] sm:$0xff]
    %v798 = vmul.f32 %v796, %v796
    %v799 = vmul.f32 %v797, %v797
    %800 = vmatprep.subr.mxu0 0.0
    %v801 = vand.u32 %v65, 4294901760
    %802 = vmatpush1.msra.mxu0 %v801
    %803 = vmatprep.subr.mxu0 0.0
    %v804 = vand.u32 %v66, 4294901760
    %805 = vmatpush1.msra.mxu0 %v804
    %806 = vmatprep.subr.mxu0 0.0
    %v807 = vand.u32 %v67, 4294901760
    %808 = vmatpush1.msra.mxu0 %v807
    %809 = vmatprep.subr.mxu0 0.0
    %v810 = vand.u32 %v68, 4294901760
    %811 = vmatpush1.msra.mxu0 %v810
    %812 = vmatprep.subr.mxu0 0.0
    %v813 = vand.u32 %v69, 4294901760
    %814 = vmatpush1.msra.mxu0 %v813
    %815 = vmatprep.subr.mxu0 0.0
    %v816 = vand.u32 %v70, 4294901760
    %817 = vmatpush1.msra.mxu0 %v816
    %818 = vmatprep.subr.mxu0 0.0
    %v819 = vand.u32 %v71, 4294901760
    %820 = vmatpush1.msra.mxu0 %v819
    %821 = vmatprep.subr.mxu0 0.0
    %v822 = vand.u32 %v72, 4294901760
    %823 = vmatpush1.msra.mxu0 %v822
    %824 = vmatprep.subr.mxu0 0.0
    %v825 = vand.u32 %v73, 4294901760
    %826 = vmatpush1.msra.mxu0 %v825
    %827 = vmatprep.subr.mxu0 0.0
    %v828 = vand.u32 %v74, 4294901760
    %829 = vmatpush1.msra.mxu0 %v828
    %830 = vmatprep.subr.mxu0 0.0
    %v831 = vand.u32 %v75, 4294901760
    %832 = vmatpush1.msra.mxu0 %v831
    %833 = vmatprep.subr.mxu0 0.0
    %v834 = vand.u32 %v76, 4294901760
    %835 = vmatpush1.msra.mxu0 %v834
    %836 = vmatprep.subr.mxu0 0.0
    %v837 = vand.u32 %v77, 4294901760
    %838 = vmatpush1.msra.mxu0 %v837
    %839 = vmatprep.subr.mxu0 0.0
    %v840 = vand.u32 %v78, 4294901760
    %841 = vmatpush1.msra.mxu0 %v840
    %842 = vmatprep.subr.mxu0 0.0
    %v843 = vand.u32 %v79, 4294901760
    %844 = vmatpush1.msra.mxu0 %v843
    %845 = vmatprep.subr.mxu0 0.0
    %v846 = vand.u32 %v80, 4294901760
    %847 = vmatpush1.msra.mxu0 %v846
    %848 = vmatprep.subr.mxu0 0.0
    %849 = vmatpush1.msra.mxu0 0.0
    %850 = vmatprep.subr.mxu0 0.0
    %851 = vmatpush1.msra.mxu0 0.0
    %852 = vmatprep.subr.mxu0 0.0
    %853 = vmatpush1.msra.mxu0 0.0
    %854 = vmatprep.subr.mxu0 0.0
    %855 = vmatpush1.msra.mxu0 0.0
    %856 = vmatprep.subr.mxu0 0.0
    %857 = vmatpush1.msra.mxu0 0.0
    %858 = vmatprep.subr.mxu0 0.0
    %859 = vmatpush1.msra.mxu0 0.0
    %860 = vmatprep.subr.mxu0 0.0
    %861 = vmatpush1.msra.mxu0 0.0
    %862 = vmatprep.subr.mxu0 0.0
    %863 = vmatpush1.msra.mxu0 0.0
    %864 = vmatprep.subr.mxu0 0.0
    %865 = vmatpush1.msra.mxu0 0.0
    %866 = vmatprep.subr.mxu0 0.0
    %867 = vmatpush1.msra.mxu0 0.0
    %868 = vmatprep.subr.mxu0 0.0
    %869 = vmatpush1.msra.mxu0 0.0
    %870 = vmatprep.subr.mxu0 0.0
    %871 = vmatpush1.msra.mxu0 0.0
    %872 = vmatprep.subr.mxu0 0.0
    %873 = vmatpush1.msra.mxu0 0.0
    %874 = vmatprep.subr.mxu0 0.0
    %875 = vmatpush1.msra.mxu0 0.0
    %876 = vmatprep.subr.mxu0 0.0
    %877 = vmatpush1.msra.mxu0 0.0
    %878 = vmatprep.subr.mxu0 0.0
    %879 = vmatpush1.msra.mxu0 0.0
    %880 = vmatprep.mubr.f32.mxu0 0.0
    %v881 = vand.u32 %v798, 4294901760
    %v882 = vsub.f32 %v798, %v881
    %v883 = vand.u32 %v882, 4294901760
    %v884 = vsub.f32 %v882, %v883
    %v885 = vand.u32 %v884, 4294901760
    %886 = vmatmul.mubr.f32.gmra.mrb[0].mxu0 %v885
    %v887 = vpop.f32.mrb[0].mxu0
    %v888 = vadd.f32 0.0, %v887
    %v889 = vpop.f32.mrb[0].mxu0
    %890 = vmatprep.mubr.f32.mxu0 0.0
    %v891 = vand.u32 %v799, 4294901760
    %v892 = vsub.f32 %v799, %v891
    %v893 = vand.u32 %v892, 4294901760
    %v894 = vsub.f32 %v892, %v893
    %v895 = vand.u32 %v894, 4294901760
    %896 = vmatmul.mubr.f32.gmra.mrb[0].mxu0 %v895
    %v897 = vpop.f32.mrb[0].mxu0
    %v898 = vadd.f32 0.0, %v897
    %v899 = vpop.f32.mrb[0].mxu0
    %900 = vdwg.mxu0
    %901 = vmatprep.subr.mxu0 0.0
    %v902 = vand.u32 %v65, 4294901760
    %v903 = vsub.f32 %v65, %v902
    %v904 = vand.u32 %v903, 4294901760
    %v905 = vsub.f32 %v903, %v904
    %v906 = vand.u32 %v905, 4294901760
    %907 = vmatpush1.msra.mxu0 %v906
    %908 = vmatprep.subr.mxu0 0.0
    %v909 = vand.u32 %v66, 4294901760
    %v910 = vsub.f32 %v66, %v909
    %v911 = vand.u32 %v910, 4294901760
    %v912 = vsub.f32 %v910, %v911
    %v913 = vand.u32 %v912, 4294901760
    %914 = vmatpush1.msra.mxu0 %v913
    %915 = vmatprep.subr.mxu0 0.0
    %v916 = vand.u32 %v67, 4294901760
    %v917 = vsub.f32 %v67, %v916
    %v918 = vand.u32 %v917, 4294901760
    %v919 = vsub.f32 %v917, %v918
    %v920 = vand.u32 %v919, 4294901760
    %921 = vmatpush1.msra.mxu0 %v920
    %922 = vmatprep.subr.mxu0 0.0
    %v923 = vand.u32 %v68, 4294901760
    %v924 = vsub.f32 %v68, %v923
    %v925 = vand.u32 %v924, 4294901760
    %v926 = vsub.f32 %v924, %v925
    %v927 = vand.u32 %v926, 4294901760
    %928 = vmatpush1.msra.mxu0 %v927
    %929 = vmatprep.subr.mxu0 0.0
    %v930 = vand.u32 %v69, 4294901760
    %v931 = vsub.f32 %v69, %v930
    %v932 = vand.u32 %v931, 4294901760
    %v933 = vsub.f32 %v931, %v932
    %v934 = vand.u32 %v933, 4294901760
    %935 = vmatpush1.msra.mxu0 %v934
    %936 = vmatprep.subr.mxu0 0.0
    %v937 = vand.u32 %v70, 4294901760
    %v938 = vsub.f32 %v70, %v937
    %v939 = vand.u32 %v938, 4294901760
    %v940 = vsub.f32 %v938, %v939
    %v941 = vand.u32 %v940, 4294901760
    %942 = vmatpush1.msra.mxu0 %v941
    %943 = vmatprep.subr.mxu0 0.0
    %v944 = vand.u32 %v71, 4294901760
    %v945 = vsub.f32 %v71, %v944
    %v946 = vand.u32 %v945, 4294901760
    %v947 = vsub.f32 %v945, %v946
    %v948 = vand.u32 %v947, 4294901760
    %949 = vmatpush1.msra.mxu0 %v948
    %950 = vmatprep.subr.mxu0 0.0
    %v951 = vand.u32 %v72, 4294901760
    %v952 = vsub.f32 %v72, %v951
    %v953 = vand.u32 %v952, 4294901760
    %v954 = vsub.f32 %v952, %v953
    %v955 = vand.u32 %v954, 4294901760
    %956 = vmatpush1.msra.mxu0 %v955
    %957 = vmatprep.subr.mxu0 0.0
    %v958 = vand.u32 %v73, 4294901760
    %v959 = vsub.f32 %v73, %v958
    %v960 = vand.u32 %v959, 4294901760
    %v961 = vsub.f32 %v959, %v960
    %v962 = vand.u32 %v961, 4294901760
    %963 = vmatpush1.msra.mxu0 %v962
    %964 = vmatprep.subr.mxu0 0.0
    %v965 = vand.u32 %v74, 4294901760
    %v966 = vsub.f32 %v74, %v965
    %v967 = vand.u32 %v966, 4294901760
    %v968 = vsub.f32 %v966, %v967
    %v969 = vand.u32 %v968, 4294901760
    %970 = vmatpush1.msra.mxu0 %v969
    %971 = vmatprep.subr.mxu0 0.0
    %v972 = vand.u32 %v75, 4294901760
    %v973 = vsub.f32 %v75, %v972
    %v974 = vand.u32 %v973, 4294901760
    %v975 = vsub.f32 %v973, %v974
    %v976 = vand.u32 %v975, 4294901760
    %977 = vmatpush1.msra.mxu0 %v976
    %978 = vmatprep.subr.mxu0 0.0
    %v979 = vand.u32 %v76, 4294901760
    %v980 = vsub.f32 %v76, %v979
    %v981 = vand.u32 %v980, 4294901760
    %v982 = vsub.f32 %v980, %v981
    %v983 = vand.u32 %v982, 4294901760
    %984 = vmatpush1.msra.mxu0 %v983
    %985 = vmatprep.subr.mxu0 0.0
    %v986 = vand.u32 %v77, 4294901760
    %v987 = vsub.f32 %v77, %v986
    %v988 = vand.u32 %v987, 4294901760
    %v989 = vsub.f32 %v987, %v988
    %v990 = vand.u32 %v989, 4294901760
    %991 = vmatpush1.msra.mxu0 %v990
    %992 = vmatprep.subr.mxu0 0.0
    %v993 = vand.u32 %v78, 4294901760
    %v994 = vsub.f32 %v78, %v993
    %v995 = vand.u32 %v994, 4294901760
    %v996 = vsub.f32 %v994, %v995
    %v997 = vand.u32 %v996, 4294901760
    %998 = vmatpush1.msra.mxu0 %v997
    %999 = vmatprep.subr.mxu0 0.0
    %v1000 = vand.u32 %v79, 4294901760
    %v1001 = vsub.f32 %v79, %v1000
    %v1002 = vand.u32 %v1001, 4294901760
    %v1003 = vsub.f32 %v1001, %v1002
    %v1004 = vand.u32 %v1003, 4294901760
    %1005 = vmatpush1.msra.mxu0 %v1004
    %1006 = vmatprep.subr.mxu0 0.0
    %v1007 = vand.u32 %v80, 4294901760
    %v1008 = vsub.f32 %v80, %v1007
    %v1009 = vand.u32 %v1008, 4294901760
    %v1010 = vsub.f32 %v1008, %v1009
    %v1011 = vand.u32 %v1010, 4294901760
    %1012 = vmatpush1.msra.mxu0 %v1011
    %1013 = vmatprep.subr.mxu0 0.0
    %1014 = vmatpush1.msra.mxu0 0.0
    %1015 = vmatprep.subr.mxu0 0.0
    %1016 = vmatpush1.msra.mxu0 0.0
    %1017 = vmatprep.subr.mxu0 0.0
    %1018 = vmatpush1.msra.mxu0 0.0
    %1019 = vmatprep.subr.mxu0 0.0
    %1020 = vmatpush1.msra.mxu0 0.0
    %1021 = vmatprep.subr.mxu0 0.0
    %1022 = vmatpush1.msra.mxu0 0.0
    %1023 = vmatprep.subr.mxu0 0.0
    %1024 = vmatpush1.msra.mxu0 0.0
    %1025 = vmatprep.subr.mxu0 0.0
    %1026 = vmatpush1.msra.mxu0 0.0
    %1027 = vmatprep.subr.mxu0 0.0
    %1028 = vmatpush1.msra.mxu0 0.0
    %1029 = vmatprep.subr.mxu0 0.0
    %1030 = vmatpush1.msra.mxu0 0.0
    %1031 = vmatprep.subr.mxu0 0.0
    %1032 = vmatpush1.msra.mxu0 0.0
    %1033 = vmatprep.subr.mxu0 0.0
    %1034 = vmatpush1.msra.mxu0 0.0
    %1035 = vmatprep.subr.mxu0 0.0
    %1036 = vmatpush1.msra.mxu0 0.0
    %1037 = vmatprep.subr.mxu0 0.0
    %1038 = vmatpush1.msra.mxu0 0.0
    %1039 = vmatprep.subr.mxu0 0.0
    %1040 = vmatpush1.msra.mxu0 0.0
    %1041 = vmatprep.subr.mxu0 0.0
    %1042 = vmatpush1.msra.mxu0 0.0
    %1043 = vmatprep.subr.mxu0 0.0
    %1044 = vmatpush1.msra.mxu0 0.0
    %1045 = vmatprep.mubr.f32.mxu0 0.0
    %v1046 = vand.u32 %v798, 4294901760
    %1047 = vmatmul.mubr.f32.gmra.mrb[0].mxu0 %v1046
    %v1048 = vpop.f32.mrb[0].mxu0
    %v1049 = vadd.f32 %v888, %v1048
    %v1050 = vpop.f32.mrb[0].mxu0
    %1051 = vmatprep.mubr.f32.mxu0 0.0
    %v1052 = vand.u32 %v799, 4294901760
    %1053 = vmatmul.mubr.f32.gmra.mrb[0].mxu0 %v1052
    %v1054 = vpop.f32.mrb[0].mxu0
    %v1055 = vadd.f32 %v898, %v1054
    %v1056 = vpop.f32.mrb[0].mxu0
    %1057 = vdwg.mxu0
    %1058 = vmatprep.subr.mxu0 0.0
    %v1059 = vand.u32 %v65, 4294901760
    %v1060 = vsub.f32 %v65, %v1059
    %1061 = vmatpush1.msra.mxu0 %v1060
    %1062 = vmatprep.subr.mxu0 0.0
    %v1063 = vand.u32 %v66, 4294901760
    %v1064 = vsub.f32 %v66, %v1063
    %1065 = vmatpush1.msra.mxu0 %v1064
    %1066 = vmatprep.subr.mxu0 0.0
    %v1067 = vand.u32 %v67, 4294901760
    %v1068 = vsub.f32 %v67, %v1067
    %1069 = vmatpush1.msra.mxu0 %v1068
    %1070 = vmatprep.subr.mxu0 0.0
    %v1071 = vand.u32 %v68, 4294901760
    %v1072 = vsub.f32 %v68, %v1071
    %1073 = vmatpush1.msra.mxu0 %v1072
    %1074 = vmatprep.subr.mxu0 0.0
    %v1075 = vand.u32 %v69, 4294901760
    %v1076 = vsub.f32 %v69, %v1075
    %1077 = vmatpush1.msra.mxu0 %v1076
    %1078 = vmatprep.subr.mxu0 0.0
    %v1079 = vand.u32 %v70, 4294901760
    %v1080 = vsub.f32 %v70, %v1079
    %1081 = vmatpush1.msra.mxu0 %v1080
    %1082 = vmatprep.subr.mxu0 0.0
    %v1083 = vand.u32 %v71, 4294901760
    %v1084 = vsub.f32 %v71, %v1083
    %1085 = vmatpush1.msra.mxu0 %v1084
    %1086 = vmatprep.subr.mxu0 0.0
    %v1087 = vand.u32 %v72, 4294901760
    %v1088 = vsub.f32 %v72, %v1087
    %1089 = vmatpush1.msra.mxu0 %v1088
    %1090 = vmatprep.subr.mxu0 0.0
    %v1091 = vand.u32 %v73, 4294901760
    %v1092 = vsub.f32 %v73, %v1091
    %1093 = vmatpush1.msra.mxu0 %v1092
    %1094 = vmatprep.subr.mxu0 0.0
    %v1095 = vand.u32 %v74, 4294901760
    %v1096 = vsub.f32 %v74, %v1095
    %1097 = vmatpush1.msra.mxu0 %v1096
    %1098 = vmatprep.subr.mxu0 0.0
    %v1099 = vand.u32 %v75, 4294901760
    %v1100 = vsub.f32 %v75, %v1099
    %1101 = vmatpush1.msra.mxu0 %v1100
    %1102 = vmatprep.subr.mxu0 0.0
    %v1103 = vand.u32 %v76, 4294901760
    %v1104 = vsub.f32 %v76, %v1103
    %1105 = vmatpush1.msra.mxu0 %v1104
    %1106 = vmatprep.subr.mxu0 0.0
    %v1107 = vand.u32 %v77, 4294901760
    %v1108 = vsub.f32 %v77, %v1107
    %1109 = vmatpush1.msra.mxu0 %v1108
    %1110 = vmatprep.subr.mxu0 0.0
    %v1111 = vand.u32 %v78, 4294901760
    %v1112 = vsub.f32 %v78, %v1111
    %1113 = vmatpush1.msra.mxu0 %v1112
    %1114 = vmatprep.subr.mxu0 0.0
    %v1115 = vand.u32 %v79, 4294901760
    %v1116 = vsub.f32 %v79, %v1115
    %1117 = vmatpush1.msra.mxu0 %v1116
    %1118 = vmatprep.subr.mxu0 0.0
    %v1119 = vand.u32 %v80, 4294901760
    %v1120 = vsub.f32 %v80, %v1119
    %1121 = vmatpush1.msra.mxu0 %v1120
    %1122 = vmatprep.subr.mxu0 0.0
    %1123 = vmatpush1.msra.mxu0 0.0
    %1124 = vmatprep.subr.mxu0 0.0
    %1125 = vmatpush1.msra.mxu0 0.0
    %1126 = vmatprep.subr.mxu0 0.0
    %1127 = vmatpush1.msra.mxu0 0.0
    %1128 = vmatprep.subr.mxu0 0.0
    %1129 = vmatpush1.msra.mxu0 0.0
    %1130 = vmatprep.subr.mxu0 0.0
    %1131 = vmatpush1.msra.mxu0 0.0
    %1132 = vmatprep.subr.mxu0 0.0
    %1133 = vmatpush1.msra.mxu0 0.0
    %1134 = vmatprep.subr.mxu0 0.0
    %1135 = vmatpush1.msra.mxu0 0.0
    %1136 = vmatprep.subr.mxu0 0.0
    %1137 = vmatpush1.msra.mxu0 0.0
    %1138 = vmatprep.subr.mxu0 0.0
    %1139 = vmatpush1.msra.mxu0 0.0
    %1140 = vmatprep.subr.mxu0 0.0
    %1141 = vmatpush1.msra.mxu0 0.0
    %1142 = vmatprep.subr.mxu0 0.0
    %1143 = vmatpush1.msra.mxu0 0.0
    %1144 = vmatprep.subr.mxu0 0.0
    %1145 = vmatpush1.msra.mxu0 0.0
    %1146 = vmatprep.subr.mxu0 0.0
    %1147 = vmatpush1.msra.mxu0 0.0
    %1148 = vmatprep.subr.mxu0 0.0
    %1149 = vmatpush1.msra.mxu0 0.0
    %1150 = vmatprep.subr.mxu0 0.0
    %1151 = vmatpush1.msra.mxu0 0.0
    %1152 = vmatprep.subr.mxu0 0.0
    %1153 = vmatpush1.msra.mxu0 0.0
    %1154 = vmatprep.mubr.f32.mxu0 0.0
    %v1155 = vand.u32 %v798, 4294901760
    %v1156 = vsub.f32 %v798, %v1155
    %1157 = vmatmul.mubr.f32.gmra.mrb[0].mxu0 %v1156
    %v1158 = vpop.f32.mrb[0].mxu0
    %v1159 = vadd.f32 %v1049, %v1158
    %v1160 = vpop.f32.mrb[0].mxu0
    %1161 = vmatprep.mubr.f32.mxu0 0.0
    %v1162 = vand.u32 %v799, 4294901760
    %v1163 = vsub.f32 %v799, %v1162
    %1164 = vmatmul.mubr.f32.gmra.mrb[0].mxu0 %v1163
    %v1165 = vpop.f32.mrb[0].mxu0
    %v1166 = vadd.f32 %v1055, %v1165
    %v1167 = vpop.f32.mrb[0].mxu0
    %1168 = vdwg.mxu0
    %1169 = vmatprep.subr.mxu0 0.0
    %v1170 = vand.u32 %v65, 4294901760
    %1171 = vmatpush1.msra.mxu0 %v1170
    %1172 = vmatprep.subr.mxu0 0.0
    %v1173 = vand.u32 %v66, 4294901760
    %1174 = vmatpush1.msra.mxu0 %v1173
    %1175 = vmatprep.subr.mxu0 0.0
    %v1176 = vand.u32 %v67, 4294901760
    %1177 = vmatpush1.msra.mxu0 %v1176
    %1178 = vmatprep.subr.mxu0 0.0
    %v1179 = vand.u32 %v68, 4294901760
    %1180 = vmatpush1.msra.mxu0 %v1179
    %1181 = vmatprep.subr.mxu0 0.0
    %v1182 = vand.u32 %v69, 4294901760
    %1183 = vmatpush1.msra.mxu0 %v1182
    %1184 = vmatprep.subr.mxu0 0.0
    %v1185 = vand.u32 %v70, 4294901760
    %1186 = vmatpush1.msra.mxu0 %v1185
    %1187 = vmatprep.subr.mxu0 0.0
    %v1188 = vand.u32 %v71, 4294901760
    %1189 = vmatpush1.msra.mxu0 %v1188
    %1190 = vmatprep.subr.mxu0 0.0
    %v1191 = vand.u32 %v72, 4294901760
    %1192 = vmatpush1.msra.mxu0 %v1191
    %1193 = vmatprep.subr.mxu0 0.0
    %v1194 = vand.u32 %v73, 4294901760
    %1195 = vmatpush1.msra.mxu0 %v1194
    %1196 = vmatprep.subr.mxu0 0.0
    %v1197 = vand.u32 %v74, 4294901760
    %1198 = vmatpush1.msra.mxu0 %v1197
    %1199 = vmatprep.subr.mxu0 0.0
    %v1200 = vand.u32 %v75, 4294901760
    %1201 = vmatpush1.msra.mxu0 %v1200
    %1202 = vmatprep.subr.mxu0 0.0
    %v1203 = vand.u32 %v76, 4294901760
    %1204 = vmatpush1.msra.mxu0 %v1203
    %1205 = vmatprep.subr.mxu0 0.0
    %v1206 = vand.u32 %v77, 4294901760
    %1207 = vmatpush1.msra.mxu0 %v1206
    %1208 = vmatprep.subr.mxu0 0.0
    %v1209 = vand.u32 %v78, 4294901760
    %1210 = vmatpush1.msra.mxu0 %v1209
    %1211 = vmatprep.subr.mxu0 0.0
    %v1212 = vand.u32 %v79, 4294901760
    %1213 = vmatpush1.msra.mxu0 %v1212
    %1214 = vmatprep.subr.mxu0 0.0
    %v1215 = vand.u32 %v80, 4294901760
    %1216 = vmatpush1.msra.mxu0 %v1215
    %1217 = vmatprep.subr.mxu0 0.0
    %1218 = vmatpush1.msra.mxu0 0.0
    %1219 = vmatprep.subr.mxu0 0.0
    %1220 = vmatpush1.msra.mxu0 0.0
    %1221 = vmatprep.subr.mxu0 0.0
    %1222 = vmatpush1.msra.mxu0 0.0
    %1223 = vmatprep.subr.mxu0 0.0
    %1224 = vmatpush1.msra.mxu0 0.0
    %1225 = vmatprep.subr.mxu0 0.0
    %1226 = vmatpush1.msra.mxu0 0.0
    %1227 = vmatprep.subr.mxu0 0.0
    %1228 = vmatpush1.msra.mxu0 0.0
    %1229 = vmatprep.subr.mxu0 0.0
    %1230 = vmatpush1.msra.mxu0 0.0
    %1231 = vmatprep.subr.mxu0 0.0
    %1232 = vmatpush1.msra.mxu0 0.0
    %1233 = vmatprep.subr.mxu0 0.0
    %1234 = vmatpush1.msra.mxu0 0.0
    %1235 = vmatprep.subr.mxu0 0.0
    %1236 = vmatpush1.msra.mxu0 0.0
    %1237 = vmatprep.subr.mxu0 0.0
    %1238 = vmatpush1.msra.mxu0 0.0
    %1239 = vmatprep.subr.mxu0 0.0
    %1240 = vmatpush1.msra.mxu0 0.0
    %1241 = vmatprep.subr.mxu0 0.0
    %1242 = vmatpush1.msra.mxu0 0.0
    %1243 = vmatprep.subr.mxu0 0.0
    %1244 = vmatpush1.msra.mxu0 0.0
    %1245 = vmatprep.subr.mxu0 0.0
    %1246 = vmatpush1.msra.mxu0 0.0
    %1247 = vmatprep.subr.mxu0 0.0
    %1248 = vmatpush1.msra.mxu0 0.0
    %1249 = vmatprep.mubr.f32.mxu0 0.0
    %v1250 = vand.u32 %v798, 4294901760
    %v1251 = vsub.f32 %v798, %v1250
    %v1252 = vand.u32 %v1251, 4294901760
    %1253 = vmatmul.mubr.f32.gmra.mrb[0].mxu0 %v1252
    %v1254 = vpop.f32.mrb[0].mxu0
    %v1255 = vadd.f32 %v1159, %v1254
    %v1256 = vpop.f32.mrb[0].mxu0
    %1257 = vmatprep.mubr.f32.mxu0 0.0
    %v1258 = vand.u32 %v799, 4294901760
    %v1259 = vsub.f32 %v799, %v1258
    %v1260 = vand.u32 %v1259, 4294901760
    %1261 = vmatmul.mubr.f32.gmra.mrb[0].mxu0 %v1260
    %v1262 = vpop.f32.mrb[0].mxu0
    %v1263 = vadd.f32 %v1166, %v1262
    %v1264 = vpop.f32.mrb[0].mxu0
    %1265 = vdwg.mxu0
    %1266 = vmatprep.subr.mxu0 0.0
    %v1267 = vand.u32 %v65, 4294901760
    %v1268 = vsub.f32 %v65, %v1267
    %v1269 = vand.u32 %v1268, 4294901760
    %1270 = vmatpush1.msra.mxu0 %v1269
    %1271 = vmatprep.subr.mxu0 0.0
    %v1272 = vand.u32 %v66, 4294901760
    %v1273 = vsub.f32 %v66, %v1272
    %v1274 = vand.u32 %v1273, 4294901760
    %1275 = vmatpush1.msra.mxu0 %v1274
    %1276 = vmatprep.subr.mxu0 0.0
    %v1277 = vand.u32 %v67, 4294901760
    %v1278 = vsub.f32 %v67, %v1277
    %v1279 = vand.u32 %v1278, 4294901760
    %1280 = vmatpush1.msra.mxu0 %v1279
    %1281 = vmatprep.subr.mxu0 0.0
    %v1282 = vand.u32 %v68, 4294901760
    %v1283 = vsub.f32 %v68, %v1282
    %v1284 = vand.u32 %v1283, 4294901760
    %1285 = vmatpush1.msra.mxu0 %v1284
    %1286 = vmatprep.subr.mxu0 0.0
    %v1287 = vand.u32 %v69, 4294901760
    %v1288 = vsub.f32 %v69, %v1287
    %v1289 = vand.u32 %v1288, 4294901760
    %1290 = vmatpush1.msra.mxu0 %v1289
    %1291 = vmatprep.subr.mxu0 0.0
    %v1292 = vand.u32 %v70, 4294901760
    %v1293 = vsub.f32 %v70, %v1292
    %v1294 = vand.u32 %v1293, 4294901760
    %1295 = vmatpush1.msra.mxu0 %v1294
    %1296 = vmatprep.subr.mxu0 0.0
    %v1297 = vand.u32 %v71, 4294901760
    %v1298 = vsub.f32 %v71, %v1297
    %v1299 = vand.u32 %v1298, 4294901760
    %1300 = vmatpush1.msra.mxu0 %v1299
    %1301 = vmatprep.subr.mxu0 0.0
    %v1302 = vand.u32 %v72, 4294901760
    %v1303 = vsub.f32 %v72, %v1302
    %v1304 = vand.u32 %v1303, 4294901760
    %1305 = vmatpush1.msra.mxu0 %v1304
    %1306 = vmatprep.subr.mxu0 0.0
    %v1307 = vand.u32 %v73, 4294901760
    %v1308 = vsub.f32 %v73, %v1307
    %v1309 = vand.u32 %v1308, 4294901760
    %1310 = vmatpush1.msra.mxu0 %v1309
    %1311 = vmatprep.subr.mxu0 0.0
    %v1312 = vand.u32 %v74, 4294901760
    %v1313 = vsub.f32 %v74, %v1312
    %v1314 = vand.u32 %v1313, 4294901760
    %1315 = vmatpush1.msra.mxu0 %v1314
    %1316 = vmatprep.subr.mxu0 0.0
    %v1317 = vand.u32 %v75, 4294901760
    %v1318 = vsub.f32 %v75, %v1317
    %v1319 = vand.u32 %v1318, 4294901760
    %1320 = vmatpush1.msra.mxu0 %v1319
    %1321 = vmatprep.subr.mxu0 0.0
    %v1322 = vand.u32 %v76, 4294901760
    %v1323 = vsub.f32 %v76, %v1322
    %v1324 = vand.u32 %v1323, 4294901760
    %1325 = vmatpush1.msra.mxu0 %v1324
    %1326 = vmatprep.subr.mxu0 0.0
    %v1327 = vand.u32 %v77, 4294901760
    %v1328 = vsub.f32 %v77, %v1327
    %v1329 = vand.u32 %v1328, 4294901760
    %1330 = vmatpush1.msra.mxu0 %v1329
    %1331 = vmatprep.subr.mxu0 0.0
    %v1332 = vand.u32 %v78, 4294901760
    %v1333 = vsub.f32 %v78, %v1332
    %v1334 = vand.u32 %v1333, 4294901760
    %1335 = vmatpush1.msra.mxu0 %v1334
    %1336 = vmatprep.subr.mxu0 0.0
    %v1337 = vand.u32 %v79, 4294901760
    %v1338 = vsub.f32 %v79, %v1337
    %v1339 = vand.u32 %v1338, 4294901760
    %1340 = vmatpush1.msra.mxu0 %v1339
    %1341 = vmatprep.subr.mxu0 0.0
    %v1342 = vand.u32 %v80, 4294901760
    %v1343 = vsub.f32 %v80, %v1342
    %v1344 = vand.u32 %v1343, 4294901760
    %1345 = vmatpush1.msra.mxu0 %v1344
    %1346 = vmatprep.subr.mxu0 0.0
    %1347 = vmatpush1.msra.mxu0 0.0
    %1348 = vmatprep.subr.mxu0 0.0
    %1349 = vmatpush1.msra.mxu0 0.0
    %1350 = vmatprep.subr.mxu0 0.0
    %1351 = vmatpush1.msra.mxu0 0.0
    %1352 = vmatprep.subr.mxu0 0.0
    %1353 = vmatpush1.msra.mxu0 0.0
    %1354 = vmatprep.subr.mxu0 0.0
    %1355 = vmatpush1.msra.mxu0 0.0
    %1356 = vmatprep.subr.mxu0 0.0
    %1357 = vmatpush1.msra.mxu0 0.0
    %1358 = vmatprep.subr.mxu0 0.0
    %1359 = vmatpush1.msra.mxu0 0.0
    %1360 = vmatprep.subr.mxu0 0.0
    %1361 = vmatpush1.msra.mxu0 0.0
    %1362 = vmatprep.subr.mxu0 0.0
    %1363 = vmatpush1.msra.mxu0 0.0
    %1364 = vmatprep.subr.mxu0 0.0
    %1365 = vmatpush1.msra.mxu0 0.0
    %1366 = vmatprep.subr.mxu0 0.0
    %1367 = vmatpush1.msra.mxu0 0.0
    %1368 = vmatprep.subr.mxu0 0.0
    %1369 = vmatpush1.msra.mxu0 0.0
    %1370 = vmatprep.subr.mxu0 0.0
    %1371 = vmatpush1.msra.mxu0 0.0
    %1372 = vmatprep.subr.mxu0 0.0
    %1373 = vmatpush1.msra.mxu0 0.0
    %1374 = vmatprep.subr.mxu0 0.0
    %1375 = vmatpush1.msra.mxu0 0.0
    %1376 = vmatprep.subr.mxu0 0.0
    %1377 = vmatpush1.msra.mxu0 0.0
    %1378 = vmatprep.mubr.f32.mxu0 0.0
    %v1379 = vand.u32 %v798, 4294901760
    %1380 = vmatmul.mubr.f32.gmra.mrb[0].mxu0 %v1379
    %v1381 = vpop.f32.mrb[0].mxu0
    %v1382 = vadd.f32 %v1255, %v1381
    %v1383 = vpop.f32.mrb[0].mxu0
    %1384 = vmatprep.mubr.f32.mxu0 0.0
    %v1385 = vand.u32 %v799, 4294901760
    %1386 = vmatmul.mubr.f32.gmra.mrb[0].mxu0 %v1385
    %v1387 = vpop.f32.mrb[0].mxu0
    %v1388 = vadd.f32 %v1263, %v1387
    %v1389 = vpop.f32.mrb[0].mxu0
    %1390 = vdwg.mxu0
    %1391 = vmatprep.subr.mxu0 0.0
    %v1392 = vand.u32 %v65, 4294901760
    %1393 = vmatpush1.msra.mxu0 %v1392
    %1394 = vmatprep.subr.mxu0 0.0
    %v1395 = vand.u32 %v66, 4294901760
    %1396 = vmatpush1.msra.mxu0 %v1395
    %1397 = vmatprep.subr.mxu0 0.0
    %v1398 = vand.u32 %v67, 4294901760
    %1399 = vmatpush1.msra.mxu0 %v1398
    %1400 = vmatprep.subr.mxu0 0.0
    %v1401 = vand.u32 %v68, 4294901760
    %1402 = vmatpush1.msra.mxu0 %v1401
    %1403 = vmatprep.subr.mxu0 0.0
    %v1404 = vand.u32 %v69, 4294901760
    %1405 = vmatpush1.msra.mxu0 %v1404
    %1406 = vmatprep.subr.mxu0 0.0
    %v1407 = vand.u32 %v70, 4294901760
    %1408 = vmatpush1.msra.mxu0 %v1407
    %1409 = vmatprep.subr.mxu0 0.0
    %v1410 = vand.u32 %v71, 4294901760
    %1411 = vmatpush1.msra.mxu0 %v1410
    %1412 = vmatprep.subr.mxu0 0.0
    %v1413 = vand.u32 %v72, 4294901760
    %1414 = vmatpush1.msra.mxu0 %v1413
    %1415 = vmatprep.subr.mxu0 0.0
    %v1416 = vand.u32 %v73, 4294901760
    %1417 = vmatpush1.msra.mxu0 %v1416
    %1418 = vmatprep.subr.mxu0 0.0
    %v1419 = vand.u32 %v74, 4294901760
    %1420 = vmatpush1.msra.mxu0 %v1419
    %1421 = vmatprep.subr.mxu0 0.0
    %v1422 = vand.u32 %v75, 4294901760
    %1423 = vmatpush1.msra.mxu0 %v1422
    %1424 = vmatprep.subr.mxu0 0.0
    %v1425 = vand.u32 %v76, 4294901760
    %1426 = vmatpush1.msra.mxu0 %v1425
    %1427 = vmatprep.subr.mxu0 0.0
    %v1428 = vand.u32 %v77, 4294901760
    %1429 = vmatpush1.msra.mxu0 %v1428
    %1430 = vmatprep.subr.mxu0 0.0
    %v1431 = vand.u32 %v78, 4294901760
    %1432 = vmatpush1.msra.mxu0 %v1431
    %1433 = vmatprep.subr.mxu0 0.0
    %v1434 = vand.u32 %v79, 4294901760
    %1435 = vmatpush1.msra.mxu0 %v1434
    %1436 = vmatprep.subr.mxu0 0.0
    %v1437 = vand.u32 %v80, 4294901760
    %1438 = vmatpush1.msra.mxu0 %v1437
    %1439 = vmatprep.subr.mxu0 0.0
    %1440 = vmatpush1.msra.mxu0 0.0
    %1441 = vmatprep.subr.mxu0 0.0
    %1442 = vmatpush1.msra.mxu0 0.0
    %1443 = vmatprep.subr.mxu0 0.0
    %1444 = vmatpush1.msra.mxu0 0.0
    %1445 = vmatprep.subr.mxu0 0.0
    %1446 = vmatpush1.msra.mxu0 0.0
    %1447 = vmatprep.subr.mxu0 0.0
    %1448 = vmatpush1.msra.mxu0 0.0
    %1449 = vmatprep.subr.mxu0 0.0
    %1450 = vmatpush1.msra.mxu0 0.0
    %1451 = vmatprep.subr.mxu0 0.0
    %1452 = vmatpush1.msra.mxu0 0.0
    %1453 = vmatprep.subr.mxu0 0.0
    %1454 = vmatpush1.msra.mxu0 0.0
    %1455 = vmatprep.subr.mxu0 0.0
    %1456 = vmatpush1.msra.mxu0 0.0
    %1457 = vmatprep.subr.mxu0 0.0
    %1458 = vmatpush1.msra.mxu0 0.0
    %1459 = vmatprep.subr.mxu0 0.0
    %1460 = vmatpush1.msra.mxu0 0.0
    %1461 = vmatprep.subr.mxu0 0.0
    %1462 = vmatpush1.msra.mxu0 0.0
    %1463 = vmatprep.subr.mxu0 0.0
    %1464 = vmatpush1.msra.mxu0 0.0
    %1465 = vmatprep.subr.mxu0 0.0
    %1466 = vmatpush1.msra.mxu0 0.0
    %1467 = vmatprep.subr.mxu0 0.0
    %1468 = vmatpush1.msra.mxu0 0.0
    %1469 = vmatprep.subr.mxu0 0.0
    %1470 = vmatpush1.msra.mxu0 0.0
    %1471 = vmatprep.mubr.f32.mxu0 0.0
    %v1472 = vand.u32 %v798, 4294901760
    %1473 = vmatmul.mubr.f32.gmra.mrb[0].mxu0 %v1472
    %v1474 = vpop.f32.mrb[0].mxu0
    %v1475 = vadd.f32 %v1382, %v1474
    %v1476 = vpop.f32.mrb[0].mxu0
    %1477 = vmatprep.mubr.f32.mxu0 0.0
    %v1478 = vand.u32 %v799, 4294901760
    %1479 = vmatmul.mubr.f32.gmra.mrb[0].mxu0 %v1478
    %v1480 = vpop.f32.mrb[0].mxu0
    %v1481 = vadd.f32 %v1388, %v1480
    %v1482 = vpop.f32.mrb[0].mxu0
    %1483 = vdwg.mxu0
    %v1484 = vmul.f32 %v1475, 0.03125
    %v1485 = vmul.f32 %v1481, 0.03125
    %v1486 = vadd.f32 %v1484, 1e-06
    %v1487 = vadd.f32 %v1485, 1e-06
    %v1488 = vrsqrt.pop %v1486
    %v1489 = vrsqrt.pop %v1487
    %v1490 = vld [vmem:[%s3] sm:$0x1]
    %v1491 = vmul.f32 %v796, %v1488
    %v1492 = vmul.f32 %v797, %v1489
    %v1494 = vlaneseq
    %v1495 = vshrl.u32 %v1494, 7
    %v1496 = vsub.s32 0, %v1495
    %v1497 = vrot.slane %v1490, %v1496
    %v1499 = vmul.f32 %v1491, %v1497
    %v1500 = vmul.f32 %v1492, %v1497
    %v1501 = vpack.c.bf16 %v1500, %v1499
    %v1503 = vunpack.c.l.b16 %v1501
    %v1504 = vunpack.c.h.b16 %v1501
    %v1505 = vpack.c.b16 %v1503, %v1503
    %v1506 = vpack.c.b16 %v1504, %v1504
    %1509 = vst [vmem:[#allocation9] sm:$0xf] %v1505
    %1510 = vst [vmem:[#allocation9 + $0x4] sm:$0xf] %v1506
    // Predicated region
    $region34: #{tpu_custom_call.1} parent=1 // pred_check
      _
    $region35: #{tpu_custom_call.1} parent=1 // pred_check_branch
      %1512 = sbr.rel (0) target = $region37
    $region36: #{tpu_custom_call.1} parent=1 // pred_region
      %s1514 = ssub.s32 128, 128
      %1515 = vsyncadd [#allocation4], %s1514
      %s1516 = sshll.u32 [#allocation8], 4
      %s1517 = int_to_ptr.vmem [resolvable:$true] %s1516
      %1522 = dma.vmem_to_hbm [thread:$0]  %s1517, 128, %s5, [#allocation4], 64, 64, 4
    $region37: #{tpu_custom_call.1} parent=1 // pred_fallthru
      _
    // Predicated region
    $region38: #{tpu_custom_call.1} parent=1 // pred_check
      _
    $region39: #{tpu_custom_call.1} parent=1 // pred_check_branch
      %1524 = sbr.rel (0) target = $region41
    $region40: #{tpu_custom_call.1} parent=1 // pred_region
      %s1526 = ssub.s32 128, 128
      %1527 = vsyncadd [#allocation10], %s1526
      %s1528 = sshll.u32 [#allocation9], 4
      %s1529 = int_to_ptr.vmem [resolvable:$true] %s1528
      %1534 = dma.vmem_to_hbm [thread:$0]  %s1529, 128, %s6, [#allocation10], 64, 64, 4
    $region41: #{tpu_custom_call.1} parent=1 // pred_fallthru
      _
    // Predicated region
    $region42: #{tpu_custom_call.1} parent=1 // pred_check
      _
    $region43: #{tpu_custom_call.1} parent=1 // pred_check_branch
      %1536 = sbr.rel (0) target = $region45
    $region44: #{tpu_custom_call.1} parent=1 // pred_region
      %1537 = dma.done [#allocation4], 128
    $region45: #{tpu_custom_call.1} parent=1 // pred_fallthru
      _
    // Predicated region
    $region46: #{tpu_custom_call.1} parent=1 // pred_check
      _
    $region47: #{tpu_custom_call.1} parent=1 // pred_check_branch
      %1539 = sbr.rel (0) target = $region49
    $region48: #{tpu_custom_call.1} parent=1 // pred_region
      %1540 = dma.done [#allocation10], 128
    $region49: #{tpu_custom_call.1} parent=1 // pred_fallthru
      _
    %1541 = vsyncpa [#allocation3], 1
    %1542 = vsyncpa [#allocation6], 1
    %1543 = vsyncpa [#allocation4], 1
    %1544 = vsyncpa [#allocation10], 1

</llo_original>
